<compile_context>
chip_gen: v7x
topology: tpu7x:2x2x1
jax: 0.10.0
libtpu: 0.0.40
codegen_flags: <defaults>
</compile_context>

<pallas_src>
import jax
import jax.numpy as jnp
from jax import lax
from jax.experimental import pallas as pl
from jax.experimental.pallas import tpu as pltpu

# ---- hyperparameters (the `params` dict of the original script) -------------
D_MODEL = 32
N_HEAD = 4
HEAD_SIZE = D_MODEL // N_HEAD          # 8
BLOCK_SIZE = 8                         # == T (max sequence length)
NORM_EPS = 1e-5
FF_HIDDEN = 10 * D_MODEL               # 320
FF_PAD = 384                           # 3 * 128 (zero-padded, exact)
_INV_SQRT2 = 0.7071067811865476
_NEG = -1.0e30                         # additive mask value (finite, exp -> 0)


# =============================== kernel =====================================
def decoder_kernel(src_ref, att_ref, wattn_ref, pslab_ref, w1b_ref, w2_ref,
                   relw_ref, tsel_ref, kvpm_ref, masks_ref, o_ref):
    D = D_MODEL
    H = N_HEAD
    T = BLOCK_SIZE
    R = src_ref.shape[0]               # B * T rows (both batches stacked)
    HR = H * R                         # score-tile width

    src = src_ref[...]                 # (R, D)
    att_in = att_ref[...]              # (R, D)

    wattn = wattn_ref[...]             # (D, 4D): [wq | wk*sqrt(hs) | wv | wp]
    w_qkv = wattn[:, :3 * D]
    wp = wattn[:, 3 * D:]

    pslab = pslab_ref[...]             # (8, 128): packed small vectors
    b_qkv = pslab[0:1, :3 * D]         # [bq | bk*sqrt(hs) | 0]
    bp = pslab[1:2, :D]
    g1 = pslab[2:3, :D]
    be1 = pslab[3:4, :D]
    g2 = pslab[4:5, :D]
    be2 = pslab[5:6, :D]
    b2 = pslab[6:7, :D]

    w1b = w1b_ref[...]                 # (D+1, FF_PAD): [w1 ; b1]
    w1 = w1b[:D, :]
    b1 = w1b[D:D + 1, :]
    w2 = w2_ref[...]                   # (FF_PAD, D)

    relw = relw_ref[...]               # (T*D, H*R) flattened rel-pos weights
    tsel = tsel_ref[...]               # (R, T*D)   one-hot position selector
    kvpm = kvpm_ref[...]               # (H*R, 2D + H*R): [head mask | block-sum mat]
    kvmask = kvpm[:, :2 * D]
    pmat = kvpm[:, 2 * D:]
    masks = masks_ref[...]             # (R, 2*H*R): [causal+batch | batch-only]
    mask_causal = masks[:, :HR]
    mask_plain = masks[:, HR:]

    def layernorm(v, g, be):
        mu = jnp.mean(v, axis=-1, keepdims=True)
        var = jnp.mean(jnp.square(v - mu), axis=-1, keepdims=True)
        return (v - mu) * lax.rsqrt(var + NORM_EPS) * g + be

    def mha(x, addmask):
        # fused Q/K/V projection: one (R, D) @ (D, 3D) matmul.
        # K columns/bias carry the sqrt(hs) scale (folded in the wrapper).
        qkv = jnp.dot(x, w_qkv, preferred_element_type=jnp.float32) + b_qkv
        q = qkv[:, :D]                                       # (R, D)
        kv = qkv[:, D:]                                      # (R, 2D) = [K | V]

        # block-diagonal K and V: replicate rows over heads (sublane tile) and
        # zero other heads' feature columns with the 0/1 head mask.
        kv_exp = jnp.concatenate([kv] * H, axis=0) * kvmask  # (H*R, 2D)
        k_exp = kv_exp[:, :D]
        v_exp = kv_exp[:, D:]

        # content scores: one (R,D) x (H*R,D)^T matmul -> (R, H*R)
        qk = lax.dot_general(q, k_exp, (((1,), (1,)), ((), ())),
                             preferred_element_type=jnp.float32)

        # relative-position scores as ONE matmul: select q's row-position block
        # with a one-hot mask, contract the (T*D) axis against flattened rel.
        q_sel = jnp.concatenate([q] * T, axis=1) * tsel      # (R, T*D)
        relsc = jnp.dot(q_sel, relw, preferred_element_type=jnp.float32)

        scores = qk + relsc + addmask                        # (R, H*R)

        # per-head softmax with a single exp: subtract the row max (cancels
        # within each head block), then broadcast per-block sums back with the
        # block-indicator matmul and normalise.
        m = jnp.max(scores, axis=-1, keepdims=True)
        e = jnp.exp(scores - m)
        denom = jnp.dot(e, pmat, preferred_element_type=jnp.float32)
        w = e * pl.reciprocal(denom, approx=False)           # exact: keep 1e-4 check

        # heads' outputs land in their own column blocks of v_exp, so one
        # (R,H*R)@(H*R,D) matmul already yields the concatenated head outputs.
        out_cat = jnp.dot(w, v_exp, preferred_element_type=jnp.float32)
        return jnp.dot(out_cat, wp, preferred_element_type=jnp.float32) + bp

    # ---- DecoderNetwork.forward (dropout = identity) ----
    src2 = mha(src, mask_causal)                    # s_att(src, mask=True)
    s = src + src2                                  # src = src + dropout(src2)
    s = s + layernorm(s, g1, be1)                   # src = src + norm1(src)
    a = s + att_in                                  # att = src + att
    att2 = mha(a, mask_plain)                       # s_att(att, mask=False)
    a2 = a + att2                                   # att2 = att + dropout(att2)
    trg = a2 + layernorm(a2, g1, be1)               # trg = att2 + norm1(att2)

    x_ff = layernorm(trg, g2, be2)                  # ffwd(norm2(trg))
    h1 = jnp.dot(x_ff, w1, preferred_element_type=jnp.float32) + b1   # (R, Fp)
    h1 = 0.5 * h1 * (1.0 + lax.erf(h1 * _INV_SQRT2))                  # exact GELU
    ff = jnp.dot(h1, w2, preferred_element_type=jnp.float32) + b2     # (R, D)

    # TODO(synk): the original forward reads `src_f` before ever assigning it
    # (NameError as written); the residual base is interpreted as `trg`.
    src_f = trg + ff
    src_f = layernorm(src_f, g2, be2)               # final norm2
    o_ref[...] = src_f.astype(o_ref.dtype)


# =============================== wrapper ====================================
def _pack_params(p, B):
    """Parameter packing/padding/mask building (free XLA work in the wrapper)."""
    D, H, hs, T = D_MODEL, N_HEAD, HEAD_SIZE, BLOCK_SIZE
    R = B * T
    s = float(hs) ** 0.5        # folded score scale (PyTorch bug-for-bug: multiply)

    # --- attention weight slab (D, 4D): [wq | wk*s | wv | wp] ---
    wq = jnp.concatenate([p["wq"][h] for h in range(H)], axis=1)        # (D, D)
    wk = jnp.concatenate([p["wk"][h] for h in range(H)], axis=1) * s
    wv = jnp.concatenate([p["wv"][h] for h in range(H)], axis=1)
    w_attn = jnp.concatenate([wq, wk, wv, p["wp"]], axis=1)             # (D, 4D)

    # --- small-vector slab (8, 128) ---
    bq = p["bq"].reshape(1, D)
    bk = p["bk"].reshape(1, D) * s
    b_qkv = jnp.concatenate([bq, bk, jnp.zeros((1, D), jnp.float32)], axis=1)

    def row(v):
        return jnp.pad(v.astype(jnp.float32), ((0, 0), (0, 128 - v.shape[1])))

    pslab = jnp.concatenate(
        [row(b_qkv), row(p["bp"]), row(p["g1"]), row(p["be1"]),
         row(p["g2"]), row(p["be2"]), row(p["b2"]),
         jnp.zeros((1, 128), jnp.float32)], axis=0)                     # (8, 128)

    # --- feed-forward: zero-pad hidden 320 -> 384 (exact), pack b1 under w1 ---
    w1p = jnp.pad(p["w1"], ((0, 0), (0, FF_PAD - FF_HIDDEN)))
    b1p = jnp.pad(p["b1"], ((0, 0), (0, FF_PAD - FF_HIDDEN)))
    w1b = jnp.concatenate([w1p, b1p], axis=0)                           # (D+1, Fp)
    w2p = jnp.pad(p["w2"], ((0, FF_PAD - FF_HIDDEN), (0, 0)))           # (Fp, D)

    # --- flattened rel-pos weights: relw[t*D + h*hs + c, h*R + b'*T + t'] = rel[h,t,t',c]
    eye_h = jnp.eye(H, dtype=jnp.float32)
    ones_b = jnp.ones((B,), jnp.float32)
    relw = jnp.einsum("htvc,hg,b->thcgbv", p["rel"], eye_h, ones_b
                      ).reshape(T * D, H * R)

    # --- one-hot position selector: tsel[b*T+t, u*D+d] = [u == t] ---
    eye_t = jnp.eye(T, dtype=jnp.float32)
    tsel = jnp.einsum("b,tu,d->btud", ones_b, eye_t,
                      jnp.ones((D,), jnp.float32)).reshape(R, T * D)

    # --- head mask (H*R, 2D) and block-sum matrix (H*R, H*R), packed together ---
    d_head = (jnp.arange(2 * D) % D) // hs
    h_row = jnp.repeat(jnp.arange(H), R)
    kvmask = (h_row[:, None] == d_head[None, :]).astype(jnp.float32)
    blk = jnp.arange(H * R) // R
    pmat = (blk[:, None] == blk[None, :]).astype(jnp.float32)
    kvpm = jnp.concatenate([kvmask, pmat], axis=1)                      # (H*R, 2D+H*R)

    # --- additive masks (0 / -1e30): causal+batch-blockdiag and batch-only ---
    t_row = jnp.arange(R) % T
    b_row = jnp.arange(R) // T
    cols = jnp.arange(H * R)
    t_col = cols % T
    b_col = (cols // T) % B
    same_b = b_row[:, None] == b_col[None, :]
    causal = t_col[None, :] <= t_row[:, None]
    mask_causal = jnp.where(same_b & causal, 0.0, _NEG).astype(jnp.float32)
    mask_plain = jnp.where(same_b, 0.0, _NEG).astype(jnp.float32)
    maskslab = jnp.concatenate([mask_causal, mask_plain], axis=1)       # (R, 2*H*R)

    return (w_attn, pslab, w1b, w2p, relw, tsel, kvpm, maskslab)


def decoder_forward(src, att, p):
    B, T, D = src.shape
    R = B * T
    args = (src.reshape(R, D), att.reshape(R, D)) + _pack_params(p, B)

    vmem = pl.BlockSpec(memory_space=pltpu.MemorySpace.VMEM)
    out_flat = pl.pallas_call(
        decoder_kernel,
        out_shape=jax.ShapeDtypeStruct((R, D), jnp.float32),
        in_specs=[vmem] * len(args),
        out_specs=vmem,
        cost_estimate=pl.CostEstimate(flops=2_700_000,
                                      transcendentals=8_500,
                                      bytes_accessed=250_000),
    )(*args)
    return out_flat.reshape(B, T, D)


# ---- pure-JAX reference (PyTorch semantics, for correctness check) ----------
def _layernorm_ref(x, g, b):
    mu = jnp.mean(x, axis=-1, keepdims=True)
    var = jnp.mean(jnp.square(x - mu), axis=-1, keepdims=True)
    return (x - mu) / jnp.sqrt(var + NORM_EPS) * g + b


def _mha_ref(x, p, mask):
    B, T, D = x.shape
    heads = []
    for h in range(N_HEAD):
        q = x @ p["wq"][h] + p["bq"][h]
        k = x @ p["wk"][h] + p["bk"][h]
        v = x @ p["wv"][h]
        scores = jnp.einsum("btc,bsc->bts", q, k) * (HEAD_SIZE ** 0.5)
        scores = scores + jnp.einsum("btc,tvc->btv", q, p["rel"][h, :T, :T])
        if mask:
            tril = jnp.tril(jnp.ones((T, T), dtype=bool))
            scores = jnp.where(tril, scores, -jnp.inf)
        w = jax.nn.softmax(scores, axis=-1)
        heads.append(jnp.einsum("bts,bsc->btc", w, v))
    cat = jnp.concatenate(heads, axis=-1)
    return cat @ p["wp"] + p["bp"][0]


def decoder_ref(src, att, p):
    src2 = _mha_ref(src, p, True)
    s = src + src2
    s = s + _layernorm_ref(s, p["g1"][0], p["be1"][0])
    a = s + att
    att2 = _mha_ref(a, p, False)
    a2 = a + att2
    trg = a2 + _layernorm_ref(a2, p["g1"][0], p["be1"][0])
    x_ff = _layernorm_ref(trg, p["g2"][0], p["be2"][0])
    h1 = x_ff @ p["w1"] + p["b1"][0]
    h1 = 0.5 * h1 * (1.0 + jax.scipy.special.erf(h1 * _INV_SQRT2))
    ff = h1 @ p["w2"] + p["b2"][0]
    src_f = trg + ff          # see TODO(synk) above
    return _layernorm_ref(src_f, p["g2"][0], p["be2"][0])


def make_params(key):
    ks = jax.random.split(key, 12)
    nrm = lambda k, s, sc: jax.random.normal(k, s, jnp.float32) * sc
    return {
        # per-head attention weights (stacked over heads)
        "wq": nrm(ks[0], (N_HEAD, D_MODEL, HEAD_SIZE), 0.05),
        "bq": nrm(ks[1], (N_HEAD, HEAD_SIZE), 0.05),
        "wk": nrm(ks[2], (N_HEAD, D_MODEL, HEAD_SIZE), 0.05),
        "bk": nrm(ks[3], (N_HEAD, HEAD_SIZE), 0.05),
        "wv": nrm(ks[4], (N_HEAD, D_MODEL, HEAD_SIZE), 0.05),
        "rel": nrm(ks[5], (N_HEAD, BLOCK_SIZE, BLOCK_SIZE, HEAD_SIZE), 0.1),
        # output projection
        "wp": nrm(ks[6], (D_MODEL, D_MODEL), 0.05),
        "bp": nrm(ks[7], (1, D_MODEL), 0.05),
        # layer norms (PyTorch default init: weight=1, bias=0)
        "g1": jnp.ones((1, D_MODEL), jnp.float32),
        "be1": jnp.zeros((1, D_MODEL), jnp.float32),
        "g2": jnp.ones((1, D_MODEL), jnp.float32),
        "be2": jnp.zeros((1, D_MODEL), jnp.float32),
        # feed-forward (logical hidden = 320; padded to 384 in the wrapper)
        "w1": nrm(ks[8], (D_MODEL, FF_HIDDEN), 0.05),
        "b1": nrm(ks[9], (1, FF_HIDDEN), 0.05),
        "w2": nrm(ks[10], (FF_HIDDEN, D_MODEL), 0.05),
        "b2": nrm(ks[11], (1, D_MODEL), 0.05),
    }


if __name__ == "__main__":
    key = jax.random.PRNGKey(0)
    k_src, k_att, k_p = jax.random.split(key, 3)

    B, T = 2, BLOCK_SIZE
    src = jax.random.normal(k_src, (B, T, D_MODEL), jnp.float32)
    att = jax.random.normal(k_att, (B, T, D_MODEL), jnp.float32)
    params = make_params(k_p)

    out = decoder_forward(src, att, params)
    out = jax.block_until_ready(out)

    ref = decoder_ref(src, att, params)
    assert out.shape == (B, T, D_MODEL)
    assert jnp.allclose(out, ref, atol=1e-4, rtol=1e-4), "mismatch vs reference"

    print("KERNEL_OK")
</pallas_src>

<mosaic_0001>
module attributes {stable_mosaic.version = 11 : i64} {
  func.func @decoder_kernel(%arg0: memref<16x32xf32, #tpu.memory_space<vmem>>, %arg1: memref<16x32xf32, #tpu.memory_space<vmem>>, %arg2: memref<32x128xf32, #tpu.memory_space<vmem>>, %arg3: memref<8x128xf32, #tpu.memory_space<vmem>>, %arg4: memref<33x384xf32, #tpu.memory_space<vmem>>, %arg5: memref<384x32xf32, #tpu.memory_space<vmem>>, %arg6: memref<256x64xf32, #tpu.memory_space<vmem>>, %arg7: memref<16x256xf32, #tpu.memory_space<vmem>>, %arg8: memref<64x128xf32, #tpu.memory_space<vmem>>, %arg9: memref<16x128xf32, #tpu.memory_space<vmem>>, %arg10: memref<16x32xf32, #tpu.memory_space<vmem>>) attributes {dimension_semantics = [], scalar_prefetch = 0 : i64, scratch_operands = 0 : i64, tpu.core_type = #tpu.core_type<tc>} {
    %c0 = arith.constant 0 : index
    %c0_0 = arith.constant 0 : index
    %0 = vector.load %arg0[%c0, %c0_0] : memref<16x32xf32, #tpu.memory_space<vmem>>, vector<16x32xf32>
    %c0_1 = arith.constant 0 : index
    %c0_2 = arith.constant 0 : index
    %1 = vector.load %arg1[%c0_1, %c0_2] : memref<16x32xf32, #tpu.memory_space<vmem>>, vector<16x32xf32>
    %c0_3 = arith.constant 0 : index
    %c0_4 = arith.constant 0 : index
    %2 = vector.load %arg2[%c0_3, %c0_4] : memref<32x128xf32, #tpu.memory_space<vmem>>, vector<32x128xf32>
    %3 = vector.extract_strided_slice %2 {offsets = [0, 0], sizes = [32, 96], strides = [1, 1]} : vector<32x128xf32> to vector<32x96xf32>
    %4 = vector.extract_strided_slice %2 {offsets = [0, 96], sizes = [32, 32], strides = [1, 1]} : vector<32x128xf32> to vector<32x32xf32>
    %c0_5 = arith.constant 0 : index
    %c0_6 = arith.constant 0 : index
    %5 = vector.load %arg3[%c0_5, %c0_6] : memref<8x128xf32, #tpu.memory_space<vmem>>, vector<8x128xf32>
    %6 = vector.extract_strided_slice %5 {offsets = [0, 0], sizes = [1, 96], strides = [1, 1]} : vector<8x128xf32> to vector<1x96xf32>
    %7 = vector.extract_strided_slice %5 {offsets = [1, 0], sizes = [1, 32], strides = [1, 1]} : vector<8x128xf32> to vector<1x32xf32>
    %8 = vector.extract_strided_slice %5 {offsets = [2, 0], sizes = [1, 32], strides = [1, 1]} : vector<8x128xf32> to vector<1x32xf32>
    %9 = vector.extract_strided_slice %5 {offsets = [3, 0], sizes = [1, 32], strides = [1, 1]} : vector<8x128xf32> to vector<1x32xf32>
    %10 = vector.extract_strided_slice %5 {offsets = [4, 0], sizes = [1, 32], strides = [1, 1]} : vector<8x128xf32> to vector<1x32xf32>
    %11 = vector.extract_strided_slice %5 {offsets = [5, 0], sizes = [1, 32], strides = [1, 1]} : vector<8x128xf32> to vector<1x32xf32>
    %12 = vector.extract_strided_slice %5 {offsets = [6, 0], sizes = [1, 32], strides = [1, 1]} : vector<8x128xf32> to vector<1x32xf32>
    %c0_7 = arith.constant 0 : index
    %c0_8 = arith.constant 0 : index
    %13 = vector.load %arg4[%c0_7, %c0_8] : memref<33x384xf32, #tpu.memory_space<vmem>>, vector<33x384xf32>
    %14 = vector.extract_strided_slice %13 {offsets = [0, 0], sizes = [32, 384], strides = [1, 1]} : vector<33x384xf32> to vector<32x384xf32>
    %15 = vector.extract_strided_slice %13 {offsets = [32, 0], sizes = [1, 384], strides = [1, 1]} : vector<33x384xf32> to vector<1x384xf32>
    %c0_9 = arith.constant 0 : index
    %c0_10 = arith.constant 0 : index
    %16 = vector.load %arg5[%c0_9, %c0_10] : memref<384x32xf32, #tpu.memory_space<vmem>>, vector<384x32xf32>
    %c0_11 = arith.constant 0 : index
    %c0_12 = arith.constant 0 : index
    %17 = vector.load %arg6[%c0_11, %c0_12] : memref<256x64xf32, #tpu.memory_space<vmem>>, vector<256x64xf32>
    %c0_13 = arith.constant 0 : index
    %c0_14 = arith.constant 0 : index
    %18 = vector.load %arg7[%c0_13, %c0_14] : memref<16x256xf32, #tpu.memory_space<vmem>>, vector<16x256xf32>
    %c0_15 = arith.constant 0 : index
    %c0_16 = arith.constant 0 : index
    %19 = vector.load %arg8[%c0_15, %c0_16] : memref<64x128xf32, #tpu.memory_space<vmem>>, vector<64x128xf32>
    %20 = vector.extract_strided_slice %19 {offsets = [0, 0], sizes = [64, 64], strides = [1, 1]} : vector<64x128xf32> to vector<64x64xf32>
    %21 = vector.extract_strided_slice %19 {offsets = [0, 64], sizes = [64, 64], strides = [1, 1]} : vector<64x128xf32> to vector<64x64xf32>
    %c0_17 = arith.constant 0 : index
    %c0_18 = arith.constant 0 : index
    %22 = vector.load %arg9[%c0_17, %c0_18] : memref<16x128xf32, #tpu.memory_space<vmem>>, vector<16x128xf32>
    %23 = vector.extract_strided_slice %22 {offsets = [0, 0], sizes = [16, 64], strides = [1, 1]} : vector<16x128xf32> to vector<16x64xf32>
    %24 = vector.extract_strided_slice %22 {offsets = [0, 64], sizes = [16, 64], strides = [1, 1]} : vector<16x128xf32> to vector<16x64xf32>
    %cst = arith.constant dense<0.000000e+00> : vector<16x96xf32>
    %25 = tpu.matmul %0, %3, %cst {dimension_numbers = #tpu.dot_dimension_numbers<[1], [0], [0], [1], [0, 0, 1, 1], [], []>} : vector<16x32xf32>, vector<32x96xf32>, vector<16x96xf32> -> vector<16x96xf32>
    %26 = vector.broadcast %6 : vector<1x96xf32> to vector<16x96xf32>
    %27 = arith.addf %25, %26 : vector<16x96xf32>
    %28 = vector.extract_strided_slice %27 {offsets = [0, 0], sizes = [16, 32], strides = [1, 1]} : vector<16x96xf32> to vector<16x32xf32>
    %29 = vector.extract_strided_slice %27 {offsets = [0, 32], sizes = [16, 64], strides = [1, 1]} : vector<16x96xf32> to vector<16x64xf32>
    %30 = tpu.concatenate %29, %29, %29, %29 in 0 : vector<16x64xf32>, vector<16x64xf32>, vector<16x64xf32>, vector<16x64xf32> -> vector<64x64xf32>
    %31 = arith.mulf %30, %20 : vector<64x64xf32>
    %32 = vector.extract_strided_slice %31 {offsets = [0, 0], sizes = [64, 32], strides = [1, 1]} : vector<64x64xf32> to vector<64x32xf32>
    %33 = vector.extract_strided_slice %31 {offsets = [0, 32], sizes = [64, 32], strides = [1, 1]} : vector<64x64xf32> to vector<64x32xf32>
    %cst_19 = arith.constant dense<0.000000e+00> : vector<16x64xf32>
    %34 = tpu.matmul %28, %32, %cst_19 {dimension_numbers = #tpu.dot_dimension_numbers<[1], [1], [0], [0], [0, 0, 1, 0], [], []>} : vector<16x32xf32>, vector<64x32xf32>, vector<16x64xf32> -> vector<16x64xf32>
    %35 = tpu.concatenate %28, %28, %28, %28, %28, %28, %28, %28 in 1 : vector<16x32xf32>, vector<16x32xf32>, vector<16x32xf32>, vector<16x32xf32>, vector<16x32xf32>, vector<16x32xf32>, vector<16x32xf32>, vector<16x32xf32> -> vector<16x256xf32>
    %36 = arith.mulf %35, %18 : vector<16x256xf32>
    %cst_20 = arith.constant dense<0.000000e+00> : vector<16x64xf32>
    %37 = tpu.matmul %36, %17, %cst_20 {dimension_numbers = #tpu.dot_dimension_numbers<[1], [0], [0], [1], [0, 0, 1, 1], [], []>} : vector<16x256xf32>, vector<256x64xf32>, vector<16x64xf32> -> vector<16x64xf32>
    %38 = arith.addf %34, %37 : vector<16x64xf32>
    %39 = arith.addf %38, %23 : vector<16x64xf32>
    %cst_21 = arith.constant dense<0xFF800000> : vector<16xf32>
    %40 = vector.multi_reduction <maximumf>, %39, %cst_21 [1] : vector<16x64xf32> to vector<16xf32>
    %41 = vector.shape_cast %40 : vector<16xf32> to vector<16x1xf32>
    %42 = vector.broadcast %41 : vector<16x1xf32> to vector<16x64xf32>
    %43 = arith.subf %39, %42 : vector<16x64xf32>
    %44 = math.exp %43 : vector<16x64xf32>
    %cst_22 = arith.constant dense<0.000000e+00> : vector<16x64xf32>
    %45 = tpu.matmul %44, %21, %cst_22 {dimension_numbers = #tpu.dot_dimension_numbers<[1], [0], [0], [1], [0, 0, 1, 1], [], []>} : vector<16x64xf32>, vector<64x64xf32>, vector<16x64xf32> -> vector<16x64xf32>
    %46 = tpu.reciprocal %45 : vector<16x64xf32> -> vector<16x64xf32>
    %47 = arith.mulf %44, %46 : vector<16x64xf32>
    %cst_23 = arith.constant dense<0.000000e+00> : vector<16x32xf32>
    %48 = tpu.matmul %47, %33, %cst_23 {dimension_numbers = #tpu.dot_dimension_numbers<[1], [0], [0], [1], [0, 0, 1, 1], [], []>} : vector<16x64xf32>, vector<64x32xf32>, vector<16x32xf32> -> vector<16x32xf32>
    %cst_24 = arith.constant dense<0.000000e+00> : vector<16x32xf32>
    %49 = tpu.matmul %48, %4, %cst_24 {dimension_numbers = #tpu.dot_dimension_numbers<[1], [0], [0], [1], [0, 0, 1, 1], [], []>} : vector<16x32xf32>, vector<32x32xf32>, vector<16x32xf32> -> vector<16x32xf32>
    %50 = vector.broadcast %7 : vector<1x32xf32> to vector<16x32xf32>
    %51 = arith.addf %49, %50 : vector<16x32xf32>
    %52 = arith.addf %0, %51 : vector<16x32xf32>
    %cst_25 = arith.constant dense<0.000000e+00> : vector<16xf32>
    %53 = vector.multi_reduction <add>, %52, %cst_25 [1] : vector<16x32xf32> to vector<16xf32>
    %54 = vector.shape_cast %53 : vector<16xf32> to vector<16x1xf32>
    %cst_26 = arith.constant 3.200000e+01 : f32
    %55 = vector.broadcast %cst_26 : f32 to vector<16x1xf32>
    %56 = arith.divf %54, %55 : vector<16x1xf32>
    %57 = vector.broadcast %56 : vector<16x1xf32> to vector<16x32xf32>
    %58 = arith.subf %52, %57 : vector<16x32xf32>
    %59 = arith.mulf %58, %58 : vector<16x32xf32>
    %cst_27 = arith.constant dense<0.000000e+00> : vector<16xf32>
    %60 = vector.multi_reduction <add>, %59, %cst_27 [1] : vector<16x32xf32> to vector<16xf32>
    %61 = vector.shape_cast %60 : vector<16xf32> to vector<16x1xf32>
    %cst_28 = arith.constant 3.200000e+01 : f32
    %62 = vector.broadcast %cst_28 : f32 to vector<16x1xf32>
    %63 = arith.divf %61, %62 : vector<16x1xf32>
    %64 = vector.broadcast %56 : vector<16x1xf32> to vector<16x32xf32>
    %65 = arith.subf %52, %64 : vector<16x32xf32>
    %cst_29 = arith.constant 9.99999974E-6 : f32
    %66 = vector.broadcast %cst_29 : f32 to vector<16x1xf32>
    %67 = arith.addf %63, %66 : vector<16x1xf32>
    %68 = math.rsqrt %67 : vector<16x1xf32>
    %69 = vector.broadcast %68 : vector<16x1xf32> to vector<16x32xf32>
    %70 = arith.mulf %65, %69 : vector<16x32xf32>
    %71 = vector.broadcast %8 : vector<1x32xf32> to vector<16x32xf32>
    %72 = arith.mulf %70, %71 : vector<16x32xf32>
    %73 = vector.broadcast %9 : vector<1x32xf32> to vector<16x32xf32>
    %74 = arith.addf %72, %73 : vector<16x32xf32>
    %75 = arith.addf %52, %74 : vector<16x32xf32>
    %76 = arith.addf %75, %1 : vector<16x32xf32>
    %cst_30 = arith.constant dense<0.000000e+00> : vector<16x96xf32>
    %77 = tpu.matmul %76, %3, %cst_30 {dimension_numbers = #tpu.dot_dimension_numbers<[1], [0], [0], [1], [0, 0, 1, 1], [], []>} : vector<16x32xf32>, vector<32x96xf32>, vector<16x96xf32> -> vector<16x96xf32>
    %78 = vector.broadcast %6 : vector<1x96xf32> to vector<16x96xf32>
    %79 = arith.addf %77, %78 : vector<16x96xf32>
    %80 = vector.extract_strided_slice %79 {offsets = [0, 0], sizes = [16, 32], strides = [1, 1]} : vector<16x96xf32> to vector<16x32xf32>
    %81 = vector.extract_strided_slice %79 {offsets = [0, 32], sizes = [16, 64], strides = [1, 1]} : vector<16x96xf32> to vector<16x64xf32>
    %82 = tpu.concatenate %81, %81, %81, %81 in 0 : vector<16x64xf32>, vector<16x64xf32>, vector<16x64xf32>, vector<16x64xf32> -> vector<64x64xf32>
    %83 = arith.mulf %82, %20 : vector<64x64xf32>
    %84 = vector.extract_strided_slice %83 {offsets = [0, 0], sizes = [64, 32], strides = [1, 1]} : vector<64x64xf32> to vector<64x32xf32>
    %85 = vector.extract_strided_slice %83 {offsets = [0, 32], sizes = [64, 32], strides = [1, 1]} : vector<64x64xf32> to vector<64x32xf32>
    %cst_31 = arith.constant dense<0.000000e+00> : vector<16x64xf32>
    %86 = tpu.matmul %80, %84, %cst_31 {dimension_numbers = #tpu.dot_dimension_numbers<[1], [1], [0], [0], [0, 0, 1, 0], [], []>} : vector<16x32xf32>, vector<64x32xf32>, vector<16x64xf32> -> vector<16x64xf32>
    %87 = tpu.concatenate %80, %80, %80, %80, %80, %80, %80, %80 in 1 : vector<16x32xf32>, vector<16x32xf32>, vector<16x32xf32>, vector<16x32xf32>, vector<16x32xf32>, vector<16x32xf32>, vector<16x32xf32>, vector<16x32xf32> -> vector<16x256xf32>
    %88 = arith.mulf %87, %18 : vector<16x256xf32>
    %cst_32 = arith.constant dense<0.000000e+00> : vector<16x64xf32>
    %89 = tpu.matmul %88, %17, %cst_32 {dimension_numbers = #tpu.dot_dimension_numbers<[1], [0], [0], [1], [0, 0, 1, 1], [], []>} : vector<16x256xf32>, vector<256x64xf32>, vector<16x64xf32> -> vector<16x64xf32>
    %90 = arith.addf %86, %89 : vector<16x64xf32>
    %91 = arith.addf %90, %24 : vector<16x64xf32>
    %cst_33 = arith.constant dense<0xFF800000> : vector<16xf32>
    %92 = vector.multi_reduction <maximumf>, %91, %cst_33 [1] : vector<16x64xf32> to vector<16xf32>
    %93 = vector.shape_cast %92 : vector<16xf32> to vector<16x1xf32>
    %94 = vector.broadcast %93 : vector<16x1xf32> to vector<16x64xf32>
    %95 = arith.subf %91, %94 : vector<16x64xf32>
    %96 = math.exp %95 : vector<16x64xf32>
    %cst_34 = arith.constant dense<0.000000e+00> : vector<16x64xf32>
    %97 = tpu.matmul %96, %21, %cst_34 {dimension_numbers = #tpu.dot_dimension_numbers<[1], [0], [0], [1], [0, 0, 1, 1], [], []>} : vector<16x64xf32>, vector<64x64xf32>, vector<16x64xf32> -> vector<16x64xf32>
    %98 = tpu.reciprocal %97 : vector<16x64xf32> -> vector<16x64xf32>
    %99 = arith.mulf %96, %98 : vector<16x64xf32>
    %cst_35 = arith.constant dense<0.000000e+00> : vector<16x32xf32>
    %100 = tpu.matmul %99, %85, %cst_35 {dimension_numbers = #tpu.dot_dimension_numbers<[1], [0], [0], [1], [0, 0, 1, 1], [], []>} : vector<16x64xf32>, vector<64x32xf32>, vector<16x32xf32> -> vector<16x32xf32>
    %cst_36 = arith.constant dense<0.000000e+00> : vector<16x32xf32>
    %101 = tpu.matmul %100, %4, %cst_36 {dimension_numbers = #tpu.dot_dimension_numbers<[1], [0], [0], [1], [0, 0, 1, 1], [], []>} : vector<16x32xf32>, vector<32x32xf32>, vector<16x32xf32> -> vector<16x32xf32>
    %102 = vector.broadcast %7 : vector<1x32xf32> to vector<16x32xf32>
    %103 = arith.addf %101, %102 : vector<16x32xf32>
    %104 = arith.addf %76, %103 : vector<16x32xf32>
    %cst_37 = arith.constant dense<0.000000e+00> : vector<16xf32>
    %105 = vector.multi_reduction <add>, %104, %cst_37 [1] : vector<16x32xf32> to vector<16xf32>
    %106 = vector.shape_cast %105 : vector<16xf32> to vector<16x1xf32>
    %cst_38 = arith.constant 3.200000e+01 : f32
    %107 = vector.broadcast %cst_38 : f32 to vector<16x1xf32>
    %108 = arith.divf %106, %107 : vector<16x1xf32>
    %109 = vector.broadcast %108 : vector<16x1xf32> to vector<16x32xf32>
    %110 = arith.subf %104, %109 : vector<16x32xf32>
    %111 = arith.mulf %110, %110 : vector<16x32xf32>
    %cst_39 = arith.constant dense<0.000000e+00> : vector<16xf32>
    %112 = vector.multi_reduction <add>, %111, %cst_39 [1] : vector<16x32xf32> to vector<16xf32>
    %113 = vector.shape_cast %112 : vector<16xf32> to vector<16x1xf32>
    %cst_40 = arith.constant 3.200000e+01 : f32
    %114 = vector.broadcast %cst_40 : f32 to vector<16x1xf32>
    %115 = arith.divf %113, %114 : vector<16x1xf32>
    %116 = vector.broadcast %108 : vector<16x1xf32> to vector<16x32xf32>
    %117 = arith.subf %104, %116 : vector<16x32xf32>
    %cst_41 = arith.constant 9.99999974E-6 : f32
    %118 = vector.broadcast %cst_41 : f32 to vector<16x1xf32>
    %119 = arith.addf %115, %118 : vector<16x1xf32>
    %120 = math.rsqrt %119 : vector<16x1xf32>
    %121 = vector.broadcast %120 : vector<16x1xf32> to vector<16x32xf32>
    %122 = arith.mulf %117, %121 : vector<16x32xf32>
    %123 = vector.broadcast %8 : vector<1x32xf32> to vector<16x32xf32>
    %124 = arith.mulf %122, %123 : vector<16x32xf32>
    %125 = vector.broadcast %9 : vector<1x32xf32> to vector<16x32xf32>
    %126 = arith.addf %124, %125 : vector<16x32xf32>
    %127 = arith.addf %104, %126 : vector<16x32xf32>
    %cst_42 = arith.constant dense<0.000000e+00> : vector<16xf32>
    %128 = vector.multi_reduction <add>, %127, %cst_42 [1] : vector<16x32xf32> to vector<16xf32>
    %129 = vector.shape_cast %128 : vector<16xf32> to vector<16x1xf32>
    %cst_43 = arith.constant 3.200000e+01 : f32
    %130 = vector.broadcast %cst_43 : f32 to vector<16x1xf32>
    %131 = arith.divf %129, %130 : vector<16x1xf32>
    %132 = vector.broadcast %131 : vector<16x1xf32> to vector<16x32xf32>
    %133 = arith.subf %127, %132 : vector<16x32xf32>
    %134 = arith.mulf %133, %133 : vector<16x32xf32>
    %cst_44 = arith.constant dense<0.000000e+00> : vector<16xf32>
    %135 = vector.multi_reduction <add>, %134, %cst_44 [1] : vector<16x32xf32> to vector<16xf32>
    %136 = vector.shape_cast %135 : vector<16xf32> to vector<16x1xf32>
    %cst_45 = arith.constant 3.200000e+01 : f32
    %137 = vector.broadcast %cst_45 : f32 to vector<16x1xf32>
    %138 = arith.divf %136, %137 : vector<16x1xf32>
    %139 = vector.broadcast %131 : vector<16x1xf32> to vector<16x32xf32>
    %140 = arith.subf %127, %139 : vector<16x32xf32>
    %cst_46 = arith.constant 9.99999974E-6 : f32
    %141 = vector.broadcast %cst_46 : f32 to vector<16x1xf32>
    %142 = arith.addf %138, %141 : vector<16x1xf32>
    %143 = math.rsqrt %142 : vector<16x1xf32>
    %144 = vector.broadcast %143 : vector<16x1xf32> to vector<16x32xf32>
    %145 = arith.mulf %140, %144 : vector<16x32xf32>
    %146 = vector.broadcast %10 : vector<1x32xf32> to vector<16x32xf32>
    %147 = arith.mulf %145, %146 : vector<16x32xf32>
    %148 = vector.broadcast %11 : vector<1x32xf32> to vector<16x32xf32>
    %149 = arith.addf %147, %148 : vector<16x32xf32>
    %cst_47 = arith.constant dense<0.000000e+00> : vector<16x384xf32>
    %150 = tpu.matmul %149, %14, %cst_47 {dimension_numbers = #tpu.dot_dimension_numbers<[1], [0], [0], [1], [0, 0, 1, 1], [], []>} : vector<16x32xf32>, vector<32x384xf32>, vector<16x384xf32> -> vector<16x384xf32>
    %151 = vector.broadcast %15 : vector<1x384xf32> to vector<16x384xf32>
    %152 = arith.addf %150, %151 : vector<16x384xf32>
    %cst_48 = arith.constant 5.000000e-01 : f32
    %153 = vector.broadcast %cst_48 : f32 to vector<16x384xf32>
    %154 = arith.mulf %153, %152 : vector<16x384xf32>
    %cst_49 = arith.constant 0.707106769 : f32
    %155 = vector.broadcast %cst_49 : f32 to vector<16x384xf32>
    %156 = arith.mulf %152, %155 : vector<16x384xf32>
    %157 = math.erf %156 : vector<16x384xf32>
    %cst_50 = arith.constant 1.000000e+00 : f32
    %158 = vector.broadcast %cst_50 : f32 to vector<16x384xf32>
    %159 = arith.addf %158, %157 : vector<16x384xf32>
    %160 = arith.mulf %154, %159 : vector<16x384xf32>
    %cst_51 = arith.constant dense<0.000000e+00> : vector<16x32xf32>
    %161 = tpu.matmul %160, %16, %cst_51 {dimension_numbers = #tpu.dot_dimension_numbers<[1], [0], [0], [1], [0, 0, 1, 1], [], []>} : vector<16x384xf32>, vector<384x32xf32>, vector<16x32xf32> -> vector<16x32xf32>
    %162 = vector.broadcast %12 : vector<1x32xf32> to vector<16x32xf32>
    %163 = arith.addf %161, %162 : vector<16x32xf32>
    %164 = arith.addf %127, %163 : vector<16x32xf32>
    %cst_52 = arith.constant dense<0.000000e+00> : vector<16xf32>
    %165 = vector.multi_reduction <add>, %164, %cst_52 [1] : vector<16x32xf32> to vector<16xf32>
    %166 = vector.shape_cast %165 : vector<16xf32> to vector<16x1xf32>
    %cst_53 = arith.constant 3.200000e+01 : f32
    %167 = vector.broadcast %cst_53 : f32 to vector<16x1xf32>
    %168 = arith.divf %166, %167 : vector<16x1xf32>
    %169 = vector.broadcast %168 : vector<16x1xf32> to vector<16x32xf32>
    %170 = arith.subf %164, %169 : vector<16x32xf32>
    %171 = arith.mulf %170, %170 : vector<16x32xf32>
    %cst_54 = arith.constant dense<0.000000e+00> : vector<16xf32>
    %172 = vector.multi_reduction <add>, %171, %cst_54 [1] : vector<16x32xf32> to vector<16xf32>
    %173 = vector.shape_cast %172 : vector<16xf32> to vector<16x1xf32>
    %cst_55 = arith.constant 3.200000e+01 : f32
    %174 = vector.broadcast %cst_55 : f32 to vector<16x1xf32>
    %175 = arith.divf %173, %174 : vector<16x1xf32>
    %176 = vector.broadcast %168 : vector<16x1xf32> to vector<16x32xf32>
    %177 = arith.subf %164, %176 : vector<16x32xf32>
    %cst_56 = arith.constant 9.99999974E-6 : f32
    %178 = vector.broadcast %cst_56 : f32 to vector<16x1xf32>
    %179 = arith.addf %175, %178 : vector<16x1xf32>
    %180 = math.rsqrt %179 : vector<16x1xf32>
    %181 = vector.broadcast %180 : vector<16x1xf32> to vector<16x32xf32>
    %182 = arith.mulf %177, %181 : vector<16x32xf32>
    %183 = vector.broadcast %10 : vector<1x32xf32> to vector<16x32xf32>
    %184 = arith.mulf %182, %183 : vector<16x32xf32>
    %185 = vector.broadcast %11 : vector<1x32xf32> to vector<16x32xf32>
    %186 = arith.addf %184, %185 : vector<16x32xf32>
    %c0_57 = arith.constant 0 : index
    %c0_58 = arith.constant 0 : index
    %187 = vector.load %arg10[%c0_57, %c0_58] : memref<16x32xf32, #tpu.memory_space<vmem>>, vector<16x32xf32>
    tpu.vector_store %arg10[%c0_57, %c0_58], %186 {strides = array<i32>} : memref<16x32xf32, #tpu.memory_space<vmem>>, vector<16x32xf32>,
    return
  }
}

</mosaic_0001>

<llo_original>
// kernel: tpu_custom_call.1
$region0: #{tpu_custom_call.1}
  #allocation0 [shape = 'u32[]', space=smem, size = 0x4, offset = 0x4, fixed_abs, tag = 'smem constant byte address 0x4 - core index']
  #allocation1 [shape = 'u32[144,128]{1,0:T(1,128)}', space=vmem, size = 0x12000, scoped, tag = 'internal scratch']
  %s0 = inlined_call_operand.vmem [shape: f32[16,32], index: 0, kind: input, shape index: {}]
  %s1 = inlined_call_operand.vmem [shape: f32[16,32], index: 1, kind: input, shape index: {}]
  %s2 = inlined_call_operand.vmem [shape: f32[32,128], index: 2, kind: input, shape index: {}]
  %s3 = inlined_call_operand.vmem [shape: f32[8,128], index: 3, kind: input, shape index: {}]
  %s4 = inlined_call_operand.vmem [shape: f32[33,384], index: 4, kind: input, shape index: {}]
  %s5 = inlined_call_operand.vmem [shape: f32[384,32], index: 5, kind: input, shape index: {}]
  %s6 = inlined_call_operand.vmem [shape: f32[256,64], index: 6, kind: input, shape index: {}]
  %s7 = inlined_call_operand.vmem [shape: f32[16,256], index: 7, kind: input, shape index: {}]
  %s8 = inlined_call_operand.vmem [shape: f32[64,128], index: 8, kind: input, shape index: {}]
  %s9 = inlined_call_operand.vmem [shape: f32[16,128], index: 9, kind: input, shape index: {}]
  %s10 = inlined_call_operand.hbm [shape: f32[16,32], index: 10, kind: output, shape index: {}]
  %s11 = sld [smem:[#allocation0]]
  $region50: #{tpu_custom_call.1} parent=0
    _
  %s13 = ssub.s32 1, %s11
  %s14 = scalar_select 0, %s13, %s11
  $region1: #{tpu_custom_call.1} parent=0
    #allocation2 [shape = 'u8[8192]{0}', space=vmem, size = 0x2000, scoped, tag = 'output window, operand 0, single buffered']
    #allocation3 [shape = 's32[1]{0}', space=sflag, size = 0x4, scoped, tag = 'scoped memory for tpu_custom_call.1']
    %15 = vsyncpa [#allocation3], 0
    // Predicated region
    $region2: #{tpu_custom_call.1} parent=1 // pred_check
      _
    $region3: #{tpu_custom_call.1} parent=1 // pred_check_branch
      %17 = sbr.rel (0) target = $region5
    $region4: #{tpu_custom_call.1} parent=1 // pred_region
      _
    $region5: #{tpu_custom_call.1} parent=1 // pred_fallthru
      _
    // Predicated region
    $region6: #{tpu_custom_call.1} parent=1 // pred_check
      _
    $region7: #{tpu_custom_call.1} parent=1 // pred_check_branch
      %19 = sbr.rel (0) target = $region9
    $region8: #{tpu_custom_call.1} parent=1 // pred_region
      _
    $region9: #{tpu_custom_call.1} parent=1 // pred_fallthru
      _
    // Predicated region
    $region10: #{tpu_custom_call.1} parent=1 // pred_check
      _
    $region11: #{tpu_custom_call.1} parent=1 // pred_check_branch
      %21 = sbr.rel (0) target = $region13
    $region12: #{tpu_custom_call.1} parent=1 // pred_region
      _
    $region13: #{tpu_custom_call.1} parent=1 // pred_fallthru
      _
    // Predicated region
    $region14: #{tpu_custom_call.1} parent=1 // pred_check
      _
    $region15: #{tpu_custom_call.1} parent=1 // pred_check_branch
      %23 = sbr.rel (0) target = $region17
    $region16: #{tpu_custom_call.1} parent=1 // pred_region
      _
    $region17: #{tpu_custom_call.1} parent=1 // pred_fallthru
      _
    // Predicated region
    $region18: #{tpu_custom_call.1} parent=1 // pred_check
      _
    $region19: #{tpu_custom_call.1} parent=1 // pred_check_branch
      %25 = sbr.rel (0) target = $region21
    $region20: #{tpu_custom_call.1} parent=1 // pred_region
      _
    $region21: #{tpu_custom_call.1} parent=1 // pred_fallthru
      _
    // Predicated region
    $region22: #{tpu_custom_call.1} parent=1 // pred_check
      _
    $region23: #{tpu_custom_call.1} parent=1 // pred_check_branch
      %27 = sbr.rel (0) target = $region25
    $region24: #{tpu_custom_call.1} parent=1 // pred_region
      _
    $region25: #{tpu_custom_call.1} parent=1 // pred_fallthru
      _
    // Predicated region
    $region26: #{tpu_custom_call.1} parent=1 // pred_check
      _
    $region27: #{tpu_custom_call.1} parent=1 // pred_check_branch
      %29 = sbr.rel (0) target = $region29
    $region28: #{tpu_custom_call.1} parent=1 // pred_region
      _
    $region29: #{tpu_custom_call.1} parent=1 // pred_fallthru
      _
    // Predicated region
    $region30: #{tpu_custom_call.1} parent=1 // pred_check
      _
    $region31: #{tpu_custom_call.1} parent=1 // pred_check_branch
      %31 = sbr.rel (0) target = $region33
    $region32: #{tpu_custom_call.1} parent=1 // pred_region
      _
    $region33: #{tpu_custom_call.1} parent=1 // pred_fallthru
      _
    // Predicated region
    $region34: #{tpu_custom_call.1} parent=1 // pred_check
      _
    $region35: #{tpu_custom_call.1} parent=1 // pred_check_branch
      %33 = sbr.rel (0) target = $region37
    $region36: #{tpu_custom_call.1} parent=1 // pred_region
      _
    $region37: #{tpu_custom_call.1} parent=1 // pred_fallthru
      _
    // Predicated region
    $region38: #{tpu_custom_call.1} parent=1 // pred_check
      _
    $region39: #{tpu_custom_call.1} parent=1 // pred_check_branch
      %35 = sbr.rel (0) target = $region41
    $region40: #{tpu_custom_call.1} parent=1 // pred_region
      _
    $region41: #{tpu_custom_call.1} parent=1 // pred_fallthru
      _
    %v36 = vld [vmem:[%s0] sm:$0xff]
    %v37 = vld [vmem:[%s0 + $0x8] sm:$0xff]
    %v38 = vld [vmem:[%s1] sm:$0xff]
    %v39 = vld [vmem:[%s1 + $0x8] sm:$0xff]
    %v40 = vld [vmem:[%s2] sm:$0xff]
    %v41 = vld [vmem:[%s2 + $0x8] sm:$0xff]
    %v42 = vld [vmem:[%s2 + $0x10] sm:$0xff]
    %v43 = vld [vmem:[%s2 + $0x18] sm:$0xff]
    %v44 = vld [vmem:[%s3] sm:$0xff]
    %v45 = vld [vmem:[%s4] sm:$0xff]
    %v46 = vld [vmem:[%s4 + $0x8] sm:$0xff]
    %v47 = vld [vmem:[%s4 + $0x10] sm:$0xff]
    %v48 = vld [vmem:[%s4 + $0x18] sm:$0xff]
    %v49 = vld [vmem:[%s4 + $0x20] sm:$0xff]
    %v50 = vld [vmem:[%s4 + $0x28] sm:$0xff]
    %v51 = vld [vmem:[%s4 + $0x30] sm:$0xff]
    %v52 = vld [vmem:[%s4 + $0x38] sm:$0xff]
    %v53 = vld [vmem:[%s4 + $0x40] sm:$0xff]
    %v54 = vld [vmem:[%s4 + $0x48] sm:$0xff]
    %v55 = vld [vmem:[%s4 + $0x50] sm:$0xff]
    %v56 = vld [vmem:[%s4 + $0x58] sm:$0xff]
    %v57 = vld [vmem:[%s4 + $0x60] sm:$0x1]
    %v58 = vld [vmem:[%s4 + $0x68] sm:$0x1]
    %v59 = vld [vmem:[%s4 + $0x70] sm:$0x1]
    %v60 = vld [vmem:[%s5] sm:$0xff]
    %v61 = vld [vmem:[%s5 + $0x8] sm:$0xff]
    %v62 = vld [vmem:[%s5 + $0x10] sm:$0xff]
    %v63 = vld [vmem:[%s5 + $0x18] sm:$0xff]
    %v64 = vld [vmem:[%s5 + $0x20] sm:$0xff]
    %v65 = vld [vmem:[%s5 + $0x28] sm:$0xff]
    %v66 = vld [vmem:[%s5 + $0x30] sm:$0xff]
    %v67 = vld [vmem:[%s5 + $0x38] sm:$0xff]
    %v68 = vld [vmem:[%s5 + $0x40] sm:$0xff]
    %v69 = vld [vmem:[%s5 + $0x48] sm:$0xff]
    %v70 = vld [vmem:[%s5 + $0x50] sm:$0xff]
    %v71 = vld [vmem:[%s5 + $0x58] sm:$0xff]
    %v72 = vld [vmem:[%s5 + $0x60] sm:$0xff]
    %v73 = vld [vmem:[%s5 + $0x68] sm:$0xff]
    %v74 = vld [vmem:[%s5 + $0x70] sm:$0xff]
    %v75 = vld [vmem:[%s5 + $0x78] sm:$0xff]
    %v76 = vld [vmem:[%s5 + $0x80] sm:$0xff]
    %v77 = vld [vmem:[%s5 + $0x88] sm:$0xff]
    %v78 = vld [vmem:[%s5 + $0x90] sm:$0xff]
    %v79 = vld [vmem:[%s5 + $0x98] sm:$0xff]
    %v80 = vld [vmem:[%s5 + $0xa0] sm:$0xff]
    %v81 = vld [vmem:[%s5 + $0xa8] sm:$0xff]
    %v82 = vld [vmem:[%s5 + $0xb0] sm:$0xff]
    %v83 = vld [vmem:[%s5 + $0xb8] sm:$0xff]
    %v84 = vld [vmem:[%s5 + $0xc0] sm:$0xff]
    %v85 = vld [vmem:[%s5 + $0xc8] sm:$0xff]
    %v86 = vld [vmem:[%s5 + $0xd0] sm:$0xff]
    %v87 = vld [vmem:[%s5 + $0xd8] sm:$0xff]
    %v88 = vld [vmem:[%s5 + $0xe0] sm:$0xff]
    %v89 = vld [vmem:[%s5 + $0xe8] sm:$0xff]
    %v90 = vld [vmem:[%s5 + $0xf0] sm:$0xff]
    %v91 = vld [vmem:[%s5 + $0xf8] sm:$0xff]
    %v92 = vld [vmem:[%s5 + $0x100] sm:$0xff]
    %v93 = vld [vmem:[%s5 + $0x108] sm:$0xff]
    %v94 = vld [vmem:[%s5 + $0x110] sm:$0xff]
    %v95 = vld [vmem:[%s5 + $0x118] sm:$0xff]
    %v96 = vld [vmem:[%s5 + $0x120] sm:$0xff]
    %v97 = vld [vmem:[%s5 + $0x128] sm:$0xff]
    %v98 = vld [vmem:[%s5 + $0x130] sm:$0xff]
    %v99 = vld [vmem:[%s5 + $0x138] sm:$0xff]
    %v100 = vld [vmem:[%s5 + $0x140] sm:$0xff]
    %v101 = vld [vmem:[%s5 + $0x148] sm:$0xff]
    %v102 = vld [vmem:[%s5 + $0x150] sm:$0xff]
    %v103 = vld [vmem:[%s5 + $0x158] sm:$0xff]
    %v104 = vld [vmem:[%s5 + $0x160] sm:$0xff]
    %v105 = vld [vmem:[%s5 + $0x168] sm:$0xff]
    %v106 = vld [vmem:[%s5 + $0x170] sm:$0xff]
    %v107 = vld [vmem:[%s5 + $0x178] sm:$0xff]
    %v108 = vld [vmem:[%s6] sm:$0xff]
    %v109 = vld [vmem:[%s6 + $0x8] sm:$0xff]
    %v110 = vld [vmem:[%s6 + $0x10] sm:$0xff]
    %v111 = vld [vmem:[%s6 + $0x18] sm:$0xff]
    %v112 = vld [vmem:[%s6 + $0x20] sm:$0xff]
    %v113 = vld [vmem:[%s6 + $0x28] sm:$0xff]
    %v114 = vld [vmem:[%s6 + $0x30] sm:$0xff]
    %v115 = vld [vmem:[%s6 + $0x38] sm:$0xff]
    %v116 = vld [vmem:[%s6 + $0x40] sm:$0xff]
    %v117 = vld [vmem:[%s6 + $0x48] sm:$0xff]
    %v118 = vld [vmem:[%s6 + $0x50] sm:$0xff]
    %v119 = vld [vmem:[%s6 + $0x58] sm:$0xff]
    %v120 = vld [vmem:[%s6 + $0x60] sm:$0xff]
    %v121 = vld [vmem:[%s6 + $0x68] sm:$0xff]
    %v122 = vld [vmem:[%s6 + $0x70] sm:$0xff]
    %v123 = vld [vmem:[%s6 + $0x78] sm:$0xff]
    %v124 = vld [vmem:[%s6 + $0x80] sm:$0xff]
    %v125 = vld [vmem:[%s6 + $0x88] sm:$0xff]
    %v126 = vld [vmem:[%s6 + $0x90] sm:$0xff]
    %v127 = vld [vmem:[%s6 + $0x98] sm:$0xff]
    %v128 = vld [vmem:[%s6 + $0xa0] sm:$0xff]
    %v129 = vld [vmem:[%s6 + $0xa8] sm:$0xff]
    %v130 = vld [vmem:[%s6 + $0xb0] sm:$0xff]
    %v131 = vld [vmem:[%s6 + $0xb8] sm:$0xff]
    %v132 = vld [vmem:[%s6 + $0xc0] sm:$0xff]
    %v133 = vld [vmem:[%s6 + $0xc8] sm:$0xff]
    %v134 = vld [vmem:[%s6 + $0xd0] sm:$0xff]
    %v135 = vld [vmem:[%s6 + $0xd8] sm:$0xff]
    %v136 = vld [vmem:[%s6 + $0xe0] sm:$0xff]
    %v137 = vld [vmem:[%s6 + $0xe8] sm:$0xff]
    %v138 = vld [vmem:[%s6 + $0xf0] sm:$0xff]
    %v139 = vld [vmem:[%s6 + $0xf8] sm:$0xff]
    %v140 = vld [vmem:[%s7] sm:$0xff]
    %v141 = vld [vmem:[%s7 + $0x8] sm:$0xff]
    %v142 = vld [vmem:[%s7 + $0x10] sm:$0xff]
    %v143 = vld [vmem:[%s7 + $0x18] sm:$0xff]
    %v144 = vld [vmem:[%s8] sm:$0xff]
    %v145 = vld [vmem:[%s8 + $0x8] sm:$0xff]
    %v146 = vld [vmem:[%s8 + $0x10] sm:$0xff]
    %v147 = vld [vmem:[%s8 + $0x18] sm:$0xff]
    %v148 = vld [vmem:[%s8 + $0x20] sm:$0xff]
    %v149 = vld [vmem:[%s8 + $0x28] sm:$0xff]
    %v150 = vld [vmem:[%s8 + $0x30] sm:$0xff]
    %v151 = vld [vmem:[%s8 + $0x38] sm:$0xff]
    %v152 = vld [vmem:[%s9] sm:$0xff]
    %v153 = vld [vmem:[%s9 + $0x8] sm:$0xff]
    %v154 = vlaneseq
    %v155 = vshrl.u32 %v154, 7
    %v156 = vsub.s32 0, %v155
    %v157 = vrot.slane %v44, %v156
    %vm158 = vcmask 261120
    %v160 = vsel %vm158, %v36, 0
    %v163 = vsel %vm158, %v37, 0
    %165 = vmatprep.subr.mxu0 0.0
    %166 = vmatpush1.msra.mxu0 %v40
    %167 = vmatprep.subr.mxu0 0.0
    %168 = vmatpush1.msra.mxu0 %v41
    %169 = vmatprep.subr.mxu0 0.0
    %170 = vmatpush1.msra.mxu0 %v42
    %171 = vmatprep.subr.mxu0 0.0
    %172 = vmatpush1.msra.mxu0 %v43
    %173 = vmatprep.subr.mxu0 0.0
    %174 = vmatpush1.msra.mxu0 0.0
    %175 = vmatprep.subr.mxu0 0.0
    %176 = vmatpush1.msra.mxu0 0.0
    %177 = vmatprep.subr.mxu0 0.0
    %178 = vmatpush1.msra.mxu0 0.0
    %179 = vmatprep.subr.mxu0 0.0
    %180 = vmatpush1.msra.mxu0 0.0
    %181 = vmatprep.subr.mxu0 0.0
    %182 = vmatpush1.msra.mxu0 0.0
    %183 = vmatprep.subr.mxu0 0.0
    %184 = vmatpush1.msra.mxu0 0.0
    %185 = vmatprep.subr.mxu0 0.0
    %186 = vmatpush1.msra.mxu0 0.0
    %187 = vmatprep.subr.mxu0 0.0
    %188 = vmatpush1.msra.mxu0 0.0
    %189 = vmatprep.subr.mxu0 0.0
    %190 = vmatpush1.msra.mxu0 0.0
    %191 = vmatprep.subr.mxu0 0.0
    %192 = vmatpush1.msra.mxu0 0.0
    %193 = vmatprep.subr.mxu0 0.0
    %194 = vmatpush1.msra.mxu0 0.0
    %195 = vmatprep.subr.mxu0 0.0
    %196 = vmatpush1.msra.mxu0 0.0
    %197 = vmatprep.subr.mxu0 0.0
    %198 = vmatpush1.msra.mxu0 0.0
    %199 = vmatprep.subr.mxu0 0.0
    %200 = vmatpush1.msra.mxu0 0.0
    %201 = vmatprep.subr.mxu0 0.0
    %202 = vmatpush1.msra.mxu0 0.0
    %203 = vmatprep.subr.mxu0 0.0
    %204 = vmatpush1.msra.mxu0 0.0
    %205 = vmatprep.subr.mxu0 0.0
    %206 = vmatpush1.msra.mxu0 0.0
    %207 = vmatprep.subr.mxu0 0.0
    %208 = vmatpush1.msra.mxu0 0.0
    %209 = vmatprep.subr.mxu0 0.0
    %210 = vmatpush1.msra.mxu0 0.0
    %211 = vmatprep.subr.mxu0 0.0
    %212 = vmatpush1.msra.mxu0 0.0
    %213 = vmatprep.subr.mxu0 0.0
    %214 = vmatpush1.msra.mxu0 0.0
    %215 = vmatprep.subr.mxu0 0.0
    %216 = vmatpush1.msra.mxu0 0.0
    %217 = vmatprep.subr.mxu0 0.0
    %218 = vmatpush1.msra.mxu0 0.0
    %219 = vmatprep.subr.mxu0 0.0
    %220 = vmatpush1.msra.mxu0 0.0
    %221 = vmatprep.subr.mxu0 0.0
    %222 = vmatpush1.msra.mxu0 0.0
    %223 = vmatprep.subr.mxu0 0.0
    %224 = vmatpush1.msra.mxu0 0.0
    %225 = vmatprep.subr.mxu0 0.0
    %226 = vmatpush1.msra.mxu0 0.0
    %227 = vmatprep.subr.mxu0 0.0
    %228 = vmatpush1.msra.mxu0 0.0
    %229 = vmatprep.mubr.f32.mxu0 0.0
    %230 = vmatmul.mubr.f32.gmra.mrb[0].mxu0 %v160
    %v231 = vpop.f32.mrb[0].mxu0
    %v232 = vadd.f32 %v157, %v231
    %v233 = vpop.f32.mrb[0].mxu0
    %234 = vmatprep.mubr.f32.mxu0 0.0
    %235 = vmatmul.mubr.f32.gmra.mrb[0].mxu0 %v163
    %v236 = vpop.f32.mrb[0].mxu0
    %v237 = vadd.f32 %v157, %v236
    %v238 = vpop.f32.mrb[0].mxu0
    %239 = vdwg.mxu0
    %248 = vrot.lane.b32.xlu0 %v144, 32
    %v249 = vpop.permute.xlu0 %248
    %250 = vrot.lane.b32.xlu0 %v145, 32
    %v251 = vpop.permute.xlu0 %250
    %252 = vrot.lane.b32.xlu0 %v146, 32
    %v253 = vpop.permute.xlu0 %252
    %254 = vrot.lane.b32.xlu0 %v147, 32
    %v255 = vpop.permute.xlu0 %254
    %256 = vrot.lane.b32.xlu0 %v148, 32
    %v257 = vpop.permute.xlu0 %256
    %258 = vrot.lane.b32.xlu0 %v149, 32
    %v259 = vpop.permute.xlu0 %258
    %260 = vrot.lane.b32.xlu0 %v150, 32
    %v261 = vpop.permute.xlu0 %260
    %262 = vrot.lane.b32.xlu0 %v151, 32
    %v263 = vpop.permute.xlu0 %262
    %v272 = vmul.f32 %v232, %v249
    %v273 = vmul.f32 %v237, %v251
    %v274 = vmul.f32 %v232, %v253
    %v275 = vmul.f32 %v237, %v255
    %v276 = vmul.f32 %v232, %v257
    %v277 = vmul.f32 %v237, %v259
    %v278 = vmul.f32 %v232, %v261
    %v279 = vmul.f32 %v237, %v263
    %282 = vrot.lane.b32.xlu0 %v232, 32
    %v283 = vpop.permute.xlu0 %282
    %284 = vrot.lane.b32.xlu0 %v237, 32
    %v285 = vpop.permute.xlu0 %284
    %288 = vrot.lane.b32.xlu0 %v232, 64
    %v289 = vpop.permute.xlu0 %288
    %290 = vrot.lane.b32.xlu0 %v237, 64
    %v291 = vpop.permute.xlu0 %290
    %294 = vrot.lane.b32.xlu0 %v232, 96
    %v295 = vpop.permute.xlu0 %294
    %296 = vrot.lane.b32.xlu0 %v237, 96
    %v297 = vpop.permute.xlu0 %296
    %v300 = vsel %vm158, %v232, %v283
    %v301 = vsel %vm158, %v237, %v285
    %vm302 = vcmask 523264
    %v303 = vsel %vm302, %v300, %v289
    %v304 = vsel %vm302, %v301, %v291
    %vm305 = vcmask 785408
    %v306 = vsel %vm305, %v303, %v295
    %v307 = vsel %vm305, %v304, %v297
    %v308 = vmul.f32 %v306, %v140
    %v309 = vmul.f32 %v306, %v141
    %v310 = vmul.f32 %v307, %v142
    %v311 = vmul.f32 %v307, %v143
    %312 = vmatprep.subr.mxu0 0.0
    %313 = vmatpush1.msra.mxu0 %v108
    %314 = vmatprep.subr.mxu0 0.0
    %315 = vmatpush1.msra.mxu0 %v109
    %316 = vmatprep.subr.mxu0 0.0
    %317 = vmatpush1.msra.mxu0 %v110
    %318 = vmatprep.subr.mxu0 0.0
    %319 = vmatpush1.msra.mxu0 %v111
    %320 = vmatprep.subr.mxu0 0.0
    %321 = vmatpush1.msra.mxu0 %v112
    %322 = vmatprep.subr.mxu0 0.0
    %323 = vmatpush1.msra.mxu0 %v113
    %324 = vmatprep.subr.mxu0 0.0
    %325 = vmatpush1.msra.mxu0 %v114
    %326 = vmatprep.subr.mxu0 0.0
    %327 = vmatpush1.msra.mxu0 %v115
    %328 = vmatprep.subr.mxu0 0.0
    %329 = vmatpush1.msra.mxu0 %v116
    %330 = vmatprep.subr.mxu0 0.0
    %331 = vmatpush1.msra.mxu0 %v117
    %332 = vmatprep.subr.mxu0 0.0
    %333 = vmatpush1.msra.mxu0 %v118
    %334 = vmatprep.subr.mxu0 0.0
    %335 = vmatpush1.msra.mxu0 %v119
    %336 = vmatprep.subr.mxu0 0.0
    %337 = vmatpush1.msra.mxu0 %v120
    %338 = vmatprep.subr.mxu0 0.0
    %339 = vmatpush1.msra.mxu0 %v121
    %340 = vmatprep.subr.mxu0 0.0
    %341 = vmatpush1.msra.mxu0 %v122
    %342 = vmatprep.subr.mxu0 0.0
    %343 = vmatpush1.msra.mxu0 %v123
    %344 = vmatprep.subr.mxu0 0.0
    %345 = vmatpush1.msra.mxu0 %v124
    %346 = vmatprep.subr.mxu0 0.0
    %347 = vmatpush1.msra.mxu0 %v125
    %348 = vmatprep.subr.mxu0 0.0
    %349 = vmatpush1.msra.mxu0 %v126
    %350 = vmatprep.subr.mxu0 0.0
    %351 = vmatpush1.msra.mxu0 %v127
    %352 = vmatprep.subr.mxu0 0.0
    %353 = vmatpush1.msra.mxu0 %v128
    %354 = vmatprep.subr.mxu0 0.0
    %355 = vmatpush1.msra.mxu0 %v129
    %356 = vmatprep.subr.mxu0 0.0
    %357 = vmatpush1.msra.mxu0 %v130
    %358 = vmatprep.subr.mxu0 0.0
    %359 = vmatpush1.msra.mxu0 %v131
    %360 = vmatprep.subr.mxu0 0.0
    %361 = vmatpush1.msra.mxu0 %v132
    %362 = vmatprep.subr.mxu0 0.0
    %363 = vmatpush1.msra.mxu0 %v133
    %364 = vmatprep.subr.mxu0 0.0
    %365 = vmatpush1.msra.mxu0 %v134
    %366 = vmatprep.subr.mxu0 0.0
    %367 = vmatpush1.msra.mxu0 %v135
    %368 = vmatprep.subr.mxu0 0.0
    %369 = vmatpush1.msra.mxu0 %v136
    %370 = vmatprep.subr.mxu0 0.0
    %371 = vmatpush1.msra.mxu0 %v137
    %372 = vmatprep.subr.mxu0 0.0
    %373 = vmatpush1.msra.mxu0 %v138
    %374 = vmatprep.subr.mxu0 0.0
    %375 = vmatpush1.msra.mxu0 %v139
    %376 = vmatprep.mubr.f32.mxu0 %v309
    %377 = vmatmul.mubr.f32.gmra.mrb[0].mxu0 %v308
    %v378 = vpop.f32.mrb[0].mxu0
    %v379 = vadd.f32 0.0, %v378
    %v380 = vpop.f32.mrb[0].mxu0
    %381 = vmatprep.mubr.f32.mxu0 %v311
    %382 = vmatmul.mubr.f32.gmra.mrb[0].mxu0 %v310
    %v383 = vpop.f32.mrb[0].mxu0
    %v384 = vadd.f32 0.0, %v383
    %v385 = vpop.f32.mrb[0].mxu0
    %386 = vdwg.mxu0
    %395 = vrot.lane.b32.xlu0 %v272, 96
    %v396 = vpop.permute.xlu0 %395
    %397 = vrot.lane.b32.xlu0 %v273, 96
    %v398 = vpop.permute.xlu0 %397
    %399 = vrot.lane.b32.xlu0 %v274, 96
    %v400 = vpop.permute.xlu0 %399
    %401 = vrot.lane.b32.xlu0 %v275, 96
    %v402 = vpop.permute.xlu0 %401
    %403 = vrot.lane.b32.xlu0 %v276, 96
    %v404 = vpop.permute.xlu0 %403
    %405 = vrot.lane.b32.xlu0 %v277, 96
    %v406 = vpop.permute.xlu0 %405
    %407 = vrot.lane.b32.xlu0 %v278, 96
    %v408 = vpop.permute.xlu0 %407
    %409 = vrot.lane.b32.xlu0 %v279, 96
    %v410 = vpop.permute.xlu0 %409
    %v411 = vsel %vm158, %v232, 0
    %v413 = vsel %vm158, %v237, 0
    %v415 = vsel %vm158, %v396, 0
    %v417 = vsel %vm158, %v398, 0
    %v419 = vsel %vm158, %v400, 0
    %v421 = vsel %vm158, %v402, 0
    %v423 = vsel %vm158, %v404, 0
    %v425 = vsel %vm158, %v406, 0
    %v427 = vsel %vm158, %v408, 0
    %v429 = vsel %vm158, %v410, 0
    %431 = vmatprep.subr.mxu0 0.0
    %432 = vmatpush1.xpose.msra.mxu0 %v415
    %433 = vmatprep.subr.mxu0 0.0
    %434 = vmatpush1.xpose.msra.mxu0 %v417
    %435 = vmatprep.subr.mxu0 0.0
    %436 = vmatpush1.xpose.msra.mxu0 %v419
    %437 = vmatprep.subr.mxu0 0.0
    %438 = vmatpush1.xpose.msra.mxu0 %v421
    %439 = vmatprep.subr.mxu0 0.0
    %440 = vmatpush1.xpose.msra.mxu0 %v423
    %441 = vmatprep.subr.mxu0 0.0
    %442 = vmatpush1.xpose.msra.mxu0 %v425
    %443 = vmatprep.subr.mxu0 0.0
    %444 = vmatpush1.xpose.msra.mxu0 %v427
    %445 = vmatprep.subr.mxu0 0.0
    %446 = vmatpush1.xpose.msra.mxu0 %v429
    %447 = vmatprep.subr.mxu0 0.0
    %448 = vmatpush1.xpose.msra.mxu0 0.0
    %449 = vmatprep.subr.mxu0 0.0
    %450 = vmatpush1.xpose.msra.mxu0 0.0
    %451 = vmatprep.subr.mxu0 0.0
    %452 = vmatpush1.xpose.msra.mxu0 0.0
    %453 = vmatprep.subr.mxu0 0.0
    %454 = vmatpush1.xpose.msra.mxu0 0.0
    %455 = vmatprep.subr.mxu0 0.0
    %456 = vmatpush1.xpose.msra.mxu0 0.0
    %457 = vmatprep.subr.mxu0 0.0
    %458 = vmatpush1.xpose.msra.mxu0 0.0
    %459 = vmatprep.subr.mxu0 0.0
    %460 = vmatpush1.xpose.msra.mxu0 0.0
    %461 = vmatprep.subr.mxu0 0.0
    %462 = vmatpush1.xpose.msra.mxu0 0.0
    %463 = vmatprep.subr.mxu0 0.0
    %464 = vmatpush1.xpose.msra.mxu0 0.0
    %465 = vmatprep.subr.mxu0 0.0
    %466 = vmatpush1.xpose.msra.mxu0 0.0
    %467 = vmatprep.subr.mxu0 0.0
    %468 = vmatpush1.xpose.msra.mxu0 0.0
    %469 = vmatprep.subr.mxu0 0.0
    %470 = vmatpush1.xpose.msra.mxu0 0.0
    %471 = vmatprep.subr.mxu0 0.0
    %472 = vmatpush1.xpose.msra.mxu0 0.0
    %473 = vmatprep.subr.mxu0 0.0
    %474 = vmatpush1.xpose.msra.mxu0 0.0
    %475 = vmatprep.subr.mxu0 0.0
    %476 = vmatpush1.xpose.msra.mxu0 0.0
    %477 = vmatprep.subr.mxu0 0.0
    %478 = vmatpush1.xpose.msra.mxu0 0.0
    %479 = vmatprep.subr.mxu0 0.0
    %480 = vmatpush1.xpose.msra.mxu0 0.0
    %481 = vmatprep.subr.mxu0 0.0
    %482 = vmatpush1.xpose.msra.mxu0 0.0
    %483 = vmatprep.subr.mxu0 0.0
    %484 = vmatpush1.xpose.msra.mxu0 0.0
    %485 = vmatprep.subr.mxu0 0.0
    %486 = vmatpush1.xpose.msra.mxu0 0.0
    %487 = vmatprep.subr.mxu0 0.0
    %488 = vmatpush1.xpose.msra.mxu0 0.0
    %489 = vmatprep.subr.mxu0 0.0
    %490 = vmatpush1.xpose.msra.mxu0 0.0
    %491 = vmatprep.subr.mxu0 0.0
    %492 = vmatpush1.xpose.msra.mxu0 0.0
    %493 = vmatprep.subr.mxu0 0.0
    %494 = vmatpush1.xpose.msra.mxu0 0.0
    %495 = vmatprep.mubr.f32.mxu0 0.0
    %496 = vmatmul.mubr.f32.gmra.mrb[0].mxu0 %v411
    %v497 = vpop.f32.mrb[0].mxu0
    %v498 = vadd.f32 %v379, %v497
    %v499 = vpop.f32.mrb[0].mxu0
    %500 = vmatprep.mubr.f32.mxu0 0.0
    %501 = vmatmul.mubr.f32.gmra.mrb[0].mxu0 %v413
    %v502 = vpop.f32.mrb[0].mxu0
    %v503 = vadd.f32 %v384, %v502
    %v504 = vpop.f32.mrb[0].mxu0
    %505 = vdwg.mxu0
    %v506 = vadd.f32 %v498, %v152
    %v507 = vadd.f32 %v503, %v153
    %v508 = vsel %vm302, %v506, -inf
    %509 = vmax.xlane.f32.xlu0 %v508
    %v510 = vpop.xlane.xlu0 %509
    %v511 = vsel %vm302, %v507, -inf
    %512 = vmax.xlane.f32.xlu0 %v511
    %v513 = vpop.xlane.xlu0 %512
    %v514 = vsub.f32 %v506, %v510
    %v515 = vsub.f32 %v507, %v513
    %v516 = vmul.f32 %v514, 1.442695
    %v517 = vpow.pop %v516
    %v518 = vmul.f32 %v515, 1.442695
    %v519 = vpow.pop %v518
    %520 = vrot.lane.b32.xlu0 %v144, 64
    %v521 = vpop.permute.xlu0 %520
    %522 = vrot.lane.b32.xlu0 %v145, 64
    %v523 = vpop.permute.xlu0 %522
    %524 = vrot.lane.b32.xlu0 %v146, 64
    %v525 = vpop.permute.xlu0 %524
    %526 = vrot.lane.b32.xlu0 %v147, 64
    %v527 = vpop.permute.xlu0 %526
    %528 = vrot.lane.b32.xlu0 %v148, 64
    %v529 = vpop.permute.xlu0 %528
    %530 = vrot.lane.b32.xlu0 %v149, 64
    %v531 = vpop.permute.xlu0 %530
    %532 = vrot.lane.b32.xlu0 %v150, 64
    %v533 = vpop.permute.xlu0 %532
    %534 = vrot.lane.b32.xlu0 %v151, 64
    %v535 = vpop.permute.xlu0 %534
    %v545 = vsel %vm302, %v517, 0
    %v548 = vsel %vm302, %v519, 0
    %550 = vmatprep.subr.mxu0 0.0
    %551 = vmatpush1.msra.mxu0 %v521
    %552 = vmatprep.subr.mxu0 0.0
    %553 = vmatpush1.msra.mxu0 %v523
    %554 = vmatprep.subr.mxu0 0.0
    %555 = vmatpush1.msra.mxu0 %v525
    %556 = vmatprep.subr.mxu0 0.0
    %557 = vmatpush1.msra.mxu0 %v527
    %558 = vmatprep.subr.mxu0 0.0
    %559 = vmatpush1.msra.mxu0 %v529
    %560 = vmatprep.subr.mxu0 0.0
    %561 = vmatpush1.msra.mxu0 %v531
    %562 = vmatprep.subr.mxu0 0.0
    %563 = vmatpush1.msra.mxu0 %v533
    %564 = vmatprep.subr.mxu0 0.0
    %565 = vmatpush1.msra.mxu0 %v535
    %566 = vmatprep.subr.mxu0 0.0
    %567 = vmatpush1.msra.mxu0 0.0
    %568 = vmatprep.subr.mxu0 0.0
    %569 = vmatpush1.msra.mxu0 0.0
    %570 = vmatprep.subr.mxu0 0.0
    %571 = vmatpush1.msra.mxu0 0.0
    %572 = vmatprep.subr.mxu0 0.0
    %573 = vmatpush1.msra.mxu0 0.0
    %574 = vmatprep.subr.mxu0 0.0
    %575 = vmatpush1.msra.mxu0 0.0
    %576 = vmatprep.subr.mxu0 0.0
    %577 = vmatpush1.msra.mxu0 0.0
    %578 = vmatprep.subr.mxu0 0.0
    %579 = vmatpush1.msra.mxu0 0.0
    %580 = vmatprep.subr.mxu0 0.0
    %581 = vmatpush1.msra.mxu0 0.0
    %582 = vmatprep.subr.mxu0 0.0
    %583 = vmatpush1.msra.mxu0 0.0
    %584 = vmatprep.subr.mxu0 0.0
    %585 = vmatpush1.msra.mxu0 0.0
    %586 = vmatprep.subr.mxu0 0.0
    %587 = vmatpush1.msra.mxu0 0.0
    %588 = vmatprep.subr.mxu0 0.0
    %589 = vmatpush1.msra.mxu0 0.0
    %590 = vmatprep.subr.mxu0 0.0
    %591 = vmatpush1.msra.mxu0 0.0
    %592 = vmatprep.subr.mxu0 0.0
    %593 = vmatpush1.msra.mxu0 0.0
    %594 = vmatprep.subr.mxu0 0.0
    %595 = vmatpush1.msra.mxu0 0.0
    %596 = vmatprep.subr.mxu0 0.0
    %597 = vmatpush1.msra.mxu0 0.0
    %598 = vmatprep.subr.mxu0 0.0
    %599 = vmatpush1.msra.mxu0 0.0
    %600 = vmatprep.subr.mxu0 0.0
    %601 = vmatpush1.msra.mxu0 0.0
    %602 = vmatprep.subr.mxu0 0.0
    %603 = vmatpush1.msra.mxu0 0.0
    %604 = vmatprep.subr.mxu0 0.0
    %605 = vmatpush1.msra.mxu0 0.0
    %606 = vmatprep.subr.mxu0 0.0
    %607 = vmatpush1.msra.mxu0 0.0
    %608 = vmatprep.subr.mxu0 0.0
    %609 = vmatpush1.msra.mxu0 0.0
    %610 = vmatprep.subr.mxu0 0.0
    %611 = vmatpush1.msra.mxu0 0.0
    %612 = vmatprep.subr.mxu0 0.0
    %613 = vmatpush1.msra.mxu0 0.0
    %614 = vmatprep.mubr.f32.mxu0 0.0
    %615 = vmatmul.mubr.f32.gmra.mrb[0].mxu0 %v545
    %v616 = vpop.f32.mrb[0].mxu0
    %v617 = vadd.f32 0.0, %v616
    %v618 = vpop.f32.mrb[0].mxu0
    %619 = vmatprep.mubr.f32.mxu0 0.0
    %620 = vmatmul.mubr.f32.gmra.mrb[0].mxu0 %v548
    %v621 = vpop.f32.mrb[0].mxu0
    %v622 = vadd.f32 0.0, %v621
    %v623 = vpop.f32.mrb[0].mxu0
    %624 = vdwg.mxu0
    %v625 = vrcp.pop %v617
    %v626 = vrcp.pop %v622
    %v627 = vmul.f32 %v517, %v625
    %v628 = vmul.f32 %v519, %v626
    %629 = vrot.lane.b32.xlu0 %v272, 64
    %v630 = vpop.permute.xlu0 %629
    %631 = vrot.lane.b32.xlu0 %v273, 64
    %v632 = vpop.permute.xlu0 %631
    %633 = vrot.lane.b32.xlu0 %v274, 64
    %v634 = vpop.permute.xlu0 %633
    %635 = vrot.lane.b32.xlu0 %v275, 64
    %v636 = vpop.permute.xlu0 %635
    %637 = vrot.lane.b32.xlu0 %v276, 64
    %v638 = vpop.permute.xlu0 %637
    %639 = vrot.lane.b32.xlu0 %v277, 64
    %v640 = vpop.permute.xlu0 %639
    %641 = vrot.lane.b32.xlu0 %v278, 64
    %v642 = vpop.permute.xlu0 %641
    %643 = vrot.lane.b32.xlu0 %v279, 64
    %v644 = vpop.permute.xlu0 %643
    %v654 = vsel %vm302, %v627, 0
    %v657 = vsel %vm302, %v628, 0
    %659 = vmatprep.subr.mxu0 0.0
    %660 = vmatpush1.msra.mxu0 %v630
    %661 = vmatprep.subr.mxu0 0.0
    %662 = vmatpush1.msra.mxu0 %v632
    %663 = vmatprep.subr.mxu0 0.0
    %664 = vmatpush1.msra.mxu0 %v634
    %665 = vmatprep.subr.mxu0 0.0
    %666 = vmatpush1.msra.mxu0 %v636
    %667 = vmatprep.subr.mxu0 0.0
    %668 = vmatpush1.msra.mxu0 %v638
    %669 = vmatprep.subr.mxu0 0.0
    %670 = vmatpush1.msra.mxu0 %v640
    %671 = vmatprep.subr.mxu0 0.0
    %672 = vmatpush1.msra.mxu0 %v642
    %673 = vmatprep.subr.mxu0 0.0
    %674 = vmatpush1.msra.mxu0 %v644
    %675 = vmatprep.subr.mxu0 0.0
    %676 = vmatpush1.msra.mxu0 0.0
    %677 = vmatprep.subr.mxu0 0.0
    %678 = vmatpush1.msra.mxu0 0.0
    %679 = vmatprep.subr.mxu0 0.0
    %680 = vmatpush1.msra.mxu0 0.0
    %681 = vmatprep.subr.mxu0 0.0
    %682 = vmatpush1.msra.mxu0 0.0
    %683 = vmatprep.subr.mxu0 0.0
    %684 = vmatpush1.msra.mxu0 0.0
    %685 = vmatprep.subr.mxu0 0.0
    %686 = vmatpush1.msra.mxu0 0.0
    %687 = vmatprep.subr.mxu0 0.0
    %688 = vmatpush1.msra.mxu0 0.0
    %689 = vmatprep.subr.mxu0 0.0
    %690 = vmatpush1.msra.mxu0 0.0
    %691 = vmatprep.subr.mxu0 0.0
    %692 = vmatpush1.msra.mxu0 0.0
    %693 = vmatprep.subr.mxu0 0.0
    %694 = vmatpush1.msra.mxu0 0.0
    %695 = vmatprep.subr.mxu0 0.0
    %696 = vmatpush1.msra.mxu0 0.0
    %697 = vmatprep.subr.mxu0 0.0
    %698 = vmatpush1.msra.mxu0 0.0
    %699 = vmatprep.subr.mxu0 0.0
    %700 = vmatpush1.msra.mxu0 0.0
    %701 = vmatprep.subr.mxu0 0.0
    %702 = vmatpush1.msra.mxu0 0.0
    %703 = vmatprep.subr.mxu0 0.0
    %704 = vmatpush1.msra.mxu0 0.0
    %705 = vmatprep.subr.mxu0 0.0
    %706 = vmatpush1.msra.mxu0 0.0
    %707 = vmatprep.subr.mxu0 0.0
    %708 = vmatpush1.msra.mxu0 0.0
    %709 = vmatprep.subr.mxu0 0.0
    %710 = vmatpush1.msra.mxu0 0.0
    %711 = vmatprep.subr.mxu0 0.0
    %712 = vmatpush1.msra.mxu0 0.0
    %713 = vmatprep.subr.mxu0 0.0
    %714 = vmatpush1.msra.mxu0 0.0
    %715 = vmatprep.subr.mxu0 0.0
    %716 = vmatpush1.msra.mxu0 0.0
    %717 = vmatprep.subr.mxu0 0.0
    %718 = vmatpush1.msra.mxu0 0.0
    %719 = vmatprep.subr.mxu0 0.0
    %720 = vmatpush1.msra.mxu0 0.0
    %721 = vmatprep.subr.mxu0 0.0
    %722 = vmatpush1.msra.mxu0 0.0
    %723 = vmatprep.mubr.f32.mxu0 0.0
    %724 = vmatmul.mubr.f32.gmra.mrb[0].mxu0 %v654
    %v725 = vpop.f32.mrb[0].mxu0
    %v726 = vadd.f32 0.0, %v725
    %v727 = vpop.f32.mrb[0].mxu0
    %728 = vmatprep.mubr.f32.mxu0 0.0
    %729 = vmatmul.mubr.f32.gmra.mrb[0].mxu0 %v657
    %v730 = vpop.f32.mrb[0].mxu0
    %v731 = vadd.f32 0.0, %v730
    %v732 = vpop.f32.mrb[0].mxu0
    %733 = vdwg.mxu0
    %v734 = vlaneseq
    %v735 = vshrl.u32 %v734, 7
    %v736 = vsub.s32 1, %v735
    %v737 = vrot.slane %v44, %v736
    %742 = vrot.lane.b32.xlu0 %v40, 32
    %v743 = vpop.permute.xlu0 %742
    %744 = vrot.lane.b32.xlu0 %v41, 32
    %v745 = vpop.permute.xlu0 %744
    %746 = vrot.lane.b32.xlu0 %v42, 32
    %v747 = vpop.permute.xlu0 %746
    %748 = vrot.lane.b32.xlu0 %v43, 32
    %v749 = vpop.permute.xlu0 %748
    %v755 = vsel %vm158, %v726, 0
    %v758 = vsel %vm158, %v731, 0
    %760 = vmatprep.subr.mxu0 0.0
    %761 = vmatpush1.msra.mxu0 %v743
    %762 = vmatprep.subr.mxu0 0.0
    %763 = vmatpush1.msra.mxu0 %v745
    %764 = vmatprep.subr.mxu0 0.0
    %765 = vmatpush1.msra.mxu0 %v747
    %766 = vmatprep.subr.mxu0 0.0
    %767 = vmatpush1.msra.mxu0 %v749
    %768 = vmatprep.subr.mxu0 0.0
    %769 = vmatpush1.msra.mxu0 0.0
    %770 = vmatprep.subr.mxu0 0.0
    %771 = vmatpush1.msra.mxu0 0.0
    %772 = vmatprep.subr.mxu0 0.0
    %773 = vmatpush1.msra.mxu0 0.0
    %774 = vmatprep.subr.mxu0 0.0
    %775 = vmatpush1.msra.mxu0 0.0
    %776 = vmatprep.subr.mxu0 0.0
    %777 = vmatpush1.msra.mxu0 0.0
    %778 = vmatprep.subr.mxu0 0.0
    %779 = vmatpush1.msra.mxu0 0.0
    %780 = vmatprep.subr.mxu0 0.0
    %781 = vmatpush1.msra.mxu0 0.0
    %782 = vmatprep.subr.mxu0 0.0
    %783 = vmatpush1.msra.mxu0 0.0
    %784 = vmatprep.subr.mxu0 0.0
    %785 = vmatpush1.msra.mxu0 0.0
    %786 = vmatprep.subr.mxu0 0.0
    %787 = vmatpush1.msra.mxu0 0.0
    %788 = vmatprep.subr.mxu0 0.0
    %789 = vmatpush1.msra.mxu0 0.0
    %790 = vmatprep.subr.mxu0 0.0
    %791 = vmatpush1.msra.mxu0 0.0
    %792 = vmatprep.subr.mxu0 0.0
    %793 = vmatpush1.msra.mxu0 0.0
    %794 = vmatprep.subr.mxu0 0.0
    %795 = vmatpush1.msra.mxu0 0.0
    %796 = vmatprep.subr.mxu0 0.0
    %797 = vmatpush1.msra.mxu0 0.0
    %798 = vmatprep.subr.mxu0 0.0
    %799 = vmatpush1.msra.mxu0 0.0
    %800 = vmatprep.subr.mxu0 0.0
    %801 = vmatpush1.msra.mxu0 0.0
    %802 = vmatprep.subr.mxu0 0.0
    %803 = vmatpush1.msra.mxu0 0.0
    %804 = vmatprep.subr.mxu0 0.0
    %805 = vmatpush1.msra.mxu0 0.0
    %806 = vmatprep.subr.mxu0 0.0
    %807 = vmatpush1.msra.mxu0 0.0
    %808 = vmatprep.subr.mxu0 0.0
    %809 = vmatpush1.msra.mxu0 0.0
    %810 = vmatprep.subr.mxu0 0.0
    %811 = vmatpush1.msra.mxu0 0.0
    %812 = vmatprep.subr.mxu0 0.0
    %813 = vmatpush1.msra.mxu0 0.0
    %814 = vmatprep.subr.mxu0 0.0
    %815 = vmatpush1.msra.mxu0 0.0
    %816 = vmatprep.subr.mxu0 0.0
    %817 = vmatpush1.msra.mxu0 0.0
    %818 = vmatprep.subr.mxu0 0.0
    %819 = vmatpush1.msra.mxu0 0.0
    %820 = vmatprep.subr.mxu0 0.0
    %821 = vmatpush1.msra.mxu0 0.0
    %822 = vmatprep.subr.mxu0 0.0
    %823 = vmatpush1.msra.mxu0 0.0
    %824 = vmatprep.mubr.f32.mxu0 0.0
    %825 = vmatmul.mubr.f32.gmra.mrb[0].mxu0 %v755
    %v826 = vpop.f32.mrb[0].mxu0
    %v827 = vadd.f32 %v737, %v826
    %v828 = vpop.f32.mrb[0].mxu0
    %829 = vmatprep.mubr.f32.mxu0 0.0
    %830 = vmatmul.mubr.f32.gmra.mrb[0].mxu0 %v758
    %v831 = vpop.f32.mrb[0].mxu0
    %v832 = vadd.f32 %v737, %v831
    %v833 = vpop.f32.mrb[0].mxu0
    %834 = vdwg.mxu0
    %v835 = vadd.f32 %v36, %v827
    %v836 = vadd.f32 %v37, %v832
    %v837 = vsel %vm158, %v835, 0.0
    %838 = vadd.xlane.f32.xlu0 %v837
    %v839 = vpop.xlane.xlu0 %838
    %v840 = vsel %vm158, %v836, 0.0
    %841 = vadd.xlane.f32.xlu0 %v840
    %v842 = vpop.xlane.xlu0 %841
    %v843 = vrcp.pop 32.0
    %v844 = vmul.f32 %v839, %v843
    %v845 = vmul.f32 %v842, %v843
    %v846 = vsub.f32 %v835, %v844
    %v847 = vsub.f32 %v836, %v845
    %v848 = vmul.f32 %v846, %v846
    %v849 = vmul.f32 %v847, %v847
    %v850 = vsel %vm158, %v848, 0.0
    %851 = vadd.xlane.f32.xlu0 %v850
    %v852 = vpop.xlane.xlu0 %851
    %v853 = vsel %vm158, %v849, 0.0
    %854 = vadd.xlane.f32.xlu0 %v853
    %v855 = vpop.xlane.xlu0 %854
    %v856 = vmul.f32 %v852, %v843
    %v857 = vmul.f32 %v855, %v843
    %v858 = vadd.f32 %v856, 1e-05
    %v859 = vadd.f32 %v857, 1e-05
    %v860 = vrsqrt.pop %v858
    %v861 = vrsqrt.pop %v859
    %v862 = vmul.f32 %v846, %v860
    %v863 = vmul.f32 %v847, %v861
    %v864 = vlaneseq
    %v865 = vshrl.u32 %v864, 7
    %v866 = vsub.s32 2, %v865
    %v867 = vrot.slane %v44, %v866
    %v868 = vmul.f32 %v862, %v867
    %v869 = vmul.f32 %v863, %v867
    %v870 = vlaneseq
    %v871 = vshrl.u32 %v870, 7
    %v872 = vsub.s32 3, %v871
    %v873 = vrot.slane %v44, %v872
    %v874 = vadd.f32 %v868, %v873
    %v875 = vadd.f32 %v869, %v873
    %v876 = vadd.f32 %v835, %v874
    %v877 = vadd.f32 %v836, %v875
    %v878 = vadd.f32 %v876, %v38
    %v879 = vadd.f32 %v877, %v39
    %v881 = vsel %vm158, %v878, 0
    %v884 = vsel %vm158, %v879, 0
    %886 = vmatprep.subr.mxu0 0.0
    %887 = vmatpush1.msra.mxu0 %v40
    %888 = vmatprep.subr.mxu0 0.0
    %889 = vmatpush1.msra.mxu0 %v41
    %890 = vmatprep.subr.mxu0 0.0
    %891 = vmatpush1.msra.mxu0 %v42
    %892 = vmatprep.subr.mxu0 0.0
    %893 = vmatpush1.msra.mxu0 %v43
    %894 = vmatprep.subr.mxu0 0.0
    %895 = vmatpush1.msra.mxu0 0.0
    %896 = vmatprep.subr.mxu0 0.0
    %897 = vmatpush1.msra.mxu0 0.0
    %898 = vmatprep.subr.mxu0 0.0
    %899 = vmatpush1.msra.mxu0 0.0
    %900 = vmatprep.subr.mxu0 0.0
    %901 = vmatpush1.msra.mxu0 0.0
    %902 = vmatprep.subr.mxu0 0.0
    %903 = vmatpush1.msra.mxu0 0.0
    %904 = vmatprep.subr.mxu0 0.0
    %905 = vmatpush1.msra.mxu0 0.0
    %906 = vmatprep.subr.mxu0 0.0
    %907 = vmatpush1.msra.mxu0 0.0
    %908 = vmatprep.subr.mxu0 0.0
    %909 = vmatpush1.msra.mxu0 0.0
    %910 = vmatprep.subr.mxu0 0.0
    %911 = vmatpush1.msra.mxu0 0.0
    %912 = vmatprep.subr.mxu0 0.0
    %913 = vmatpush1.msra.mxu0 0.0
    %914 = vmatprep.subr.mxu0 0.0
    %915 = vmatpush1.msra.mxu0 0.0
    %916 = vmatprep.subr.mxu0 0.0
    %917 = vmatpush1.msra.mxu0 0.0
    %918 = vmatprep.subr.mxu0 0.0
    %919 = vmatpush1.msra.mxu0 0.0
    %920 = vmatprep.subr.mxu0 0.0
    %921 = vmatpush1.msra.mxu0 0.0
    %922 = vmatprep.subr.mxu0 0.0
    %923 = vmatpush1.msra.mxu0 0.0
    %924 = vmatprep.subr.mxu0 0.0
    %925 = vmatpush1.msra.mxu0 0.0
    %926 = vmatprep.subr.mxu0 0.0
    %927 = vmatpush1.msra.mxu0 0.0
    %928 = vmatprep.subr.mxu0 0.0
    %929 = vmatpush1.msra.mxu0 0.0
    %930 = vmatprep.subr.mxu0 0.0
    %931 = vmatpush1.msra.mxu0 0.0
    %932 = vmatprep.subr.mxu0 0.0
    %933 = vmatpush1.msra.mxu0 0.0
    %934 = vmatprep.subr.mxu0 0.0
    %935 = vmatpush1.msra.mxu0 0.0
    %936 = vmatprep.subr.mxu0 0.0
    %937 = vmatpush1.msra.mxu0 0.0
    %938 = vmatprep.subr.mxu0 0.0
    %939 = vmatpush1.msra.mxu0 0.0
    %940 = vmatprep.subr.mxu0 0.0
    %941 = vmatpush1.msra.mxu0 0.0
    %942 = vmatprep.subr.mxu0 0.0
    %943 = vmatpush1.msra.mxu0 0.0
    %944 = vmatprep.subr.mxu0 0.0
    %945 = vmatpush1.msra.mxu0 0.0
    %946 = vmatprep.subr.mxu0 0.0
    %947 = vmatpush1.msra.mxu0 0.0
    %948 = vmatprep.subr.mxu0 0.0
    %949 = vmatpush1.msra.mxu0 0.0
    %950 = vmatprep.mubr.f32.mxu0 0.0
    %951 = vmatmul.mubr.f32.gmra.mrb[0].mxu0 %v881
    %v952 = vpop.f32.mrb[0].mxu0
    %v953 = vadd.f32 %v157, %v952
    %v954 = vpop.f32.mrb[0].mxu0
    %955 = vmatprep.mubr.f32.mxu0 0.0
    %956 = vmatmul.mubr.f32.gmra.mrb[0].mxu0 %v884
    %v957 = vpop.f32.mrb[0].mxu0
    %v958 = vadd.f32 %v157, %v957
    %v959 = vpop.f32.mrb[0].mxu0
    %960 = vdwg.mxu0
    %v961 = vmul.f32 %v953, %v249
    %v962 = vmul.f32 %v958, %v251
    %v963 = vmul.f32 %v953, %v253
    %v964 = vmul.f32 %v958, %v255
    %v965 = vmul.f32 %v953, %v257
    %v966 = vmul.f32 %v958, %v259
    %v967 = vmul.f32 %v953, %v261
    %v968 = vmul.f32 %v958, %v263
    %971 = vrot.lane.b32.xlu0 %v953, 32
    %v972 = vpop.permute.xlu0 %971
    %973 = vrot.lane.b32.xlu0 %v958, 32
    %v974 = vpop.permute.xlu0 %973
    %977 = vrot.lane.b32.xlu0 %v953, 64
    %v978 = vpop.permute.xlu0 %977
    %979 = vrot.lane.b32.xlu0 %v958, 64
    %v980 = vpop.permute.xlu0 %979
    %983 = vrot.lane.b32.xlu0 %v953, 96
    %v984 = vpop.permute.xlu0 %983
    %985 = vrot.lane.b32.xlu0 %v958, 96
    %v986 = vpop.permute.xlu0 %985
    %v989 = vsel %vm158, %v953, %v972
    %v990 = vsel %vm158, %v958, %v974
    %v991 = vsel %vm302, %v989, %v978
    %v992 = vsel %vm302, %v990, %v980
    %v993 = vsel %vm305, %v991, %v984
    %v994 = vsel %vm305, %v992, %v986
    %v995 = vmul.f32 %v993, %v140
    %v996 = vmul.f32 %v993, %v141
    %v997 = vmul.f32 %v994, %v142
    %v998 = vmul.f32 %v994, %v143
    %999 = vmatprep.subr.mxu0 0.0
    %1000 = vmatpush1.msra.mxu0 %v108
    %1001 = vmatprep.subr.mxu0 0.0
    %1002 = vmatpush1.msra.mxu0 %v109
    %1003 = vmatprep.subr.mxu0 0.0
    %1004 = vmatpush1.msra.mxu0 %v110
    %1005 = vmatprep.subr.mxu0 0.0
    %1006 = vmatpush1.msra.mxu0 %v111
    %1007 = vmatprep.subr.mxu0 0.0
    %1008 = vmatpush1.msra.mxu0 %v112
    %1009 = vmatprep.subr.mxu0 0.0
    %1010 = vmatpush1.msra.mxu0 %v113
    %1011 = vmatprep.subr.mxu0 0.0
    %1012 = vmatpush1.msra.mxu0 %v114
    %1013 = vmatprep.subr.mxu0 0.0
    %1014 = vmatpush1.msra.mxu0 %v115
    %1015 = vmatprep.subr.mxu0 0.0
    %1016 = vmatpush1.msra.mxu0 %v116
    %1017 = vmatprep.subr.mxu0 0.0
    %1018 = vmatpush1.msra.mxu0 %v117
    %1019 = vmatprep.subr.mxu0 0.0
    %1020 = vmatpush1.msra.mxu0 %v118
    %1021 = vmatprep.subr.mxu0 0.0
    %1022 = vmatpush1.msra.mxu0 %v119
    %1023 = vmatprep.subr.mxu0 0.0
    %1024 = vmatpush1.msra.mxu0 %v120
    %1025 = vmatprep.subr.mxu0 0.0
    %1026 = vmatpush1.msra.mxu0 %v121
    %1027 = vmatprep.subr.mxu0 0.0
    %1028 = vmatpush1.msra.mxu0 %v122
    %1029 = vmatprep.subr.mxu0 0.0
    %1030 = vmatpush1.msra.mxu0 %v123
    %1031 = vmatprep.subr.mxu0 0.0
    %1032 = vmatpush1.msra.mxu0 %v124
    %1033 = vmatprep.subr.mxu0 0.0
    %1034 = vmatpush1.msra.mxu0 %v125
    %1035 = vmatprep.subr.mxu0 0.0
    %1036 = vmatpush1.msra.mxu0 %v126
    %1037 = vmatprep.subr.mxu0 0.0
    %1038 = vmatpush1.msra.mxu0 %v127
    %1039 = vmatprep.subr.mxu0 0.0
    %1040 = vmatpush1.msra.mxu0 %v128
    %1041 = vmatprep.subr.mxu0 0.0
    %1042 = vmatpush1.msra.mxu0 %v129
    %1043 = vmatprep.subr.mxu0 0.0
    %1044 = vmatpush1.msra.mxu0 %v130
    %1045 = vmatprep.subr.mxu0 0.0
    %1046 = vmatpush1.msra.mxu0 %v131
    %1047 = vmatprep.subr.mxu0 0.0
    %1048 = vmatpush1.msra.mxu0 %v132
    %1049 = vmatprep.subr.mxu0 0.0
    %1050 = vmatpush1.msra.mxu0 %v133
    %1051 = vmatprep.subr.mxu0 0.0
    %1052 = vmatpush1.msra.mxu0 %v134
    %1053 = vmatprep.subr.mxu0 0.0
    %1054 = vmatpush1.msra.mxu0 %v135
    %1055 = vmatprep.subr.mxu0 0.0
    %1056 = vmatpush1.msra.mxu0 %v136
    %1057 = vmatprep.subr.mxu0 0.0
    %1058 = vmatpush1.msra.mxu0 %v137
    %1059 = vmatprep.subr.mxu0 0.0
    %1060 = vmatpush1.msra.mxu0 %v138
    %1061 = vmatprep.subr.mxu0 0.0
    %1062 = vmatpush1.msra.mxu0 %v139
    %1063 = vmatprep.mubr.f32.mxu0 %v996
    %1064 = vmatmul.mubr.f32.gmra.mrb[0].mxu0 %v995
    %v1065 = vpop.f32.mrb[0].mxu0
    %v1066 = vadd.f32 0.0, %v1065
    %v1067 = vpop.f32.mrb[0].mxu0
    %1068 = vmatprep.mubr.f32.mxu0 %v998
    %1069 = vmatmul.mubr.f32.gmra.mrb[0].mxu0 %v997
    %v1070 = vpop.f32.mrb[0].mxu0
    %v1071 = vadd.f32 0.0, %v1070
    %v1072 = vpop.f32.mrb[0].mxu0
    %1073 = vdwg.mxu0
    %1082 = vrot.lane.b32.xlu0 %v961, 96
    %v1083 = vpop.permute.xlu0 %1082
    %1084 = vrot.lane.b32.xlu0 %v962, 96
    %v1085 = vpop.permute.xlu0 %1084
    %1086 = vrot.lane.b32.xlu0 %v963, 96
    %v1087 = vpop.permute.xlu0 %1086
    %1088 = vrot.lane.b32.xlu0 %v964, 96
    %v1089 = vpop.permute.xlu0 %1088
    %1090 = vrot.lane.b32.xlu0 %v965, 96
    %v1091 = vpop.permute.xlu0 %1090
    %1092 = vrot.lane.b32.xlu0 %v966, 96
    %v1093 = vpop.permute.xlu0 %1092
    %1094 = vrot.lane.b32.xlu0 %v967, 96
    %v1095 = vpop.permute.xlu0 %1094
    %1096 = vrot.lane.b32.xlu0 %v968, 96
    %v1097 = vpop.permute.xlu0 %1096
    %v1098 = vsel %vm158, %v953, 0
    %v1100 = vsel %vm158, %v958, 0
    %v1102 = vsel %vm158, %v1083, 0
    %v1104 = vsel %vm158, %v1085, 0
    %v1106 = vsel %vm158, %v1087, 0
    %v1108 = vsel %vm158, %v1089, 0
    %v1110 = vsel %vm158, %v1091, 0
    %v1112 = vsel %vm158, %v1093, 0
    %v1114 = vsel %vm158, %v1095, 0
    %v1116 = vsel %vm158, %v1097, 0
    %1118 = vmatprep.subr.mxu0 0.0
    %1119 = vmatpush1.xpose.msra.mxu0 %v1102
    %1120 = vmatprep.subr.mxu0 0.0
    %1121 = vmatpush1.xpose.msra.mxu0 %v1104
    %1122 = vmatprep.subr.mxu0 0.0
    %1123 = vmatpush1.xpose.msra.mxu0 %v1106
    %1124 = vmatprep.subr.mxu0 0.0
    %1125 = vmatpush1.xpose.msra.mxu0 %v1108
    %1126 = vmatprep.subr.mxu0 0.0
    %1127 = vmatpush1.xpose.msra.mxu0 %v1110
    %1128 = vmatprep.subr.mxu0 0.0
    %1129 = vmatpush1.xpose.msra.mxu0 %v1112
    %1130 = vmatprep.subr.mxu0 0.0
    %1131 = vmatpush1.xpose.msra.mxu0 %v1114
    %1132 = vmatprep.subr.mxu0 0.0
    %1133 = vmatpush1.xpose.msra.mxu0 %v1116
    %1134 = vmatprep.subr.mxu0 0.0
    %1135 = vmatpush1.xpose.msra.mxu0 0.0
    %1136 = vmatprep.subr.mxu0 0.0
    %1137 = vmatpush1.xpose.msra.mxu0 0.0
    %1138 = vmatprep.subr.mxu0 0.0
    %1139 = vmatpush1.xpose.msra.mxu0 0.0
    %1140 = vmatprep.subr.mxu0 0.0
    %1141 = vmatpush1.xpose.msra.mxu0 0.0
    %1142 = vmatprep.subr.mxu0 0.0
    %1143 = vmatpush1.xpose.msra.mxu0 0.0
    %1144 = vmatprep.subr.mxu0 0.0
    %1145 = vmatpush1.xpose.msra.mxu0 0.0
    %1146 = vmatprep.subr.mxu0 0.0
    %1147 = vmatpush1.xpose.msra.mxu0 0.0
    %1148 = vmatprep.subr.mxu0 0.0
    %1149 = vmatpush1.xpose.msra.mxu0 0.0
    %1150 = vmatprep.subr.mxu0 0.0
    %1151 = vmatpush1.xpose.msra.mxu0 0.0
    %1152 = vmatprep.subr.mxu0 0.0
    %1153 = vmatpush1.xpose.msra.mxu0 0.0
    %1154 = vmatprep.subr.mxu0 0.0
    %1155 = vmatpush1.xpose.msra.mxu0 0.0
    %1156 = vmatprep.subr.mxu0 0.0
    %1157 = vmatpush1.xpose.msra.mxu0 0.0
    %1158 = vmatprep.subr.mxu0 0.0
    %1159 = vmatpush1.xpose.msra.mxu0 0.0
    %1160 = vmatprep.subr.mxu0 0.0
    %1161 = vmatpush1.xpose.msra.mxu0 0.0
    %1162 = vmatprep.subr.mxu0 0.0
    %1163 = vmatpush1.xpose.msra.mxu0 0.0
    %1164 = vmatprep.subr.mxu0 0.0
    %1165 = vmatpush1.xpose.msra.mxu0 0.0
    %1166 = vmatprep.subr.mxu0 0.0
    %1167 = vmatpush1.xpose.msra.mxu0 0.0
    %1168 = vmatprep.subr.mxu0 0.0
    %1169 = vmatpush1.xpose.msra.mxu0 0.0
    %1170 = vmatprep.subr.mxu0 0.0
    %1171 = vmatpush1.xpose.msra.mxu0 0.0
    %1172 = vmatprep.subr.mxu0 0.0
    %1173 = vmatpush1.xpose.msra.mxu0 0.0
    %1174 = vmatprep.subr.mxu0 0.0
    %1175 = vmatpush1.xpose.msra.mxu0 0.0
    %1176 = vmatprep.subr.mxu0 0.0
    %1177 = vmatpush1.xpose.msra.mxu0 0.0
    %1178 = vmatprep.subr.mxu0 0.0
    %1179 = vmatpush1.xpose.msra.mxu0 0.0
    %1180 = vmatprep.subr.mxu0 0.0
    %1181 = vmatpush1.xpose.msra.mxu0 0.0
    %1182 = vmatprep.mubr.f32.mxu0 0.0
    %1183 = vmatmul.mubr.f32.gmra.mrb[0].mxu0 %v1098
    %v1184 = vpop.f32.mrb[0].mxu0
    %v1185 = vadd.f32 %v1066, %v1184
    %v1186 = vpop.f32.mrb[0].mxu0
    %1187 = vmatprep.mubr.f32.mxu0 0.0
    %1188 = vmatmul.mubr.f32.gmra.mrb[0].mxu0 %v1100
    %v1189 = vpop.f32.mrb[0].mxu0
    %v1190 = vadd.f32 %v1071, %v1189
    %v1191 = vpop.f32.mrb[0].mxu0
    %1192 = vdwg.mxu0
    %1195 = vrot.lane.b32.xlu0 %v152, 64
    %v1196 = vpop.permute.xlu0 %1195
    %1197 = vrot.lane.b32.xlu0 %v153, 64
    %v1198 = vpop.permute.xlu0 %1197
    %v1201 = vadd.f32 %v1185, %v1196
    %v1202 = vadd.f32 %v1190, %v1198
    %v1203 = vsel %vm302, %v1201, -inf
    %1204 = vmax.xlane.f32.xlu0 %v1203
    %v1205 = vpop.xlane.xlu0 %1204
    %v1206 = vsel %vm302, %v1202, -inf
    %1207 = vmax.xlane.f32.xlu0 %v1206
    %v1208 = vpop.xlane.xlu0 %1207
    %v1209 = vsub.f32 %v1201, %v1205
    %v1210 = vsub.f32 %v1202, %v1208
    %v1211 = vmul.f32 %v1209, 1.442695
    %v1212 = vpow.pop %v1211
    %v1213 = vmul.f32 %v1210, 1.442695
    %v1214 = vpow.pop %v1213
    %v1216 = vsel %vm302, %v1212, 0
    %v1219 = vsel %vm302, %v1214, 0
    %1221 = vmatprep.subr.mxu0 0.0
    %1222 = vmatpush1.msra.mxu0 %v521
    %1223 = vmatprep.subr.mxu0 0.0
    %1224 = vmatpush1.msra.mxu0 %v523
    %1225 = vmatprep.subr.mxu0 0.0
    %1226 = vmatpush1.msra.mxu0 %v525
    %1227 = vmatprep.subr.mxu0 0.0
    %1228 = vmatpush1.msra.mxu0 %v527
    %1229 = vmatprep.subr.mxu0 0.0
    %1230 = vmatpush1.msra.mxu0 %v529
    %1231 = vmatprep.subr.mxu0 0.0
    %1232 = vmatpush1.msra.mxu0 %v531
    %1233 = vmatprep.subr.mxu0 0.0
    %1234 = vmatpush1.msra.mxu0 %v533
    %1235 = vmatprep.subr.mxu0 0.0
    %1236 = vmatpush1.msra.mxu0 %v535
    %1237 = vmatprep.subr.mxu0 0.0
    %1238 = vmatpush1.msra.mxu0 0.0
    %1239 = vmatprep.subr.mxu0 0.0
    %1240 = vmatpush1.msra.mxu0 0.0
    %1241 = vmatprep.subr.mxu0 0.0
    %1242 = vmatpush1.msra.mxu0 0.0
    %1243 = vmatprep.subr.mxu0 0.0
    %1244 = vmatpush1.msra.mxu0 0.0
    %1245 = vmatprep.subr.mxu0 0.0
    %1246 = vmatpush1.msra.mxu0 0.0
    %1247 = vmatprep.subr.mxu0 0.0
    %1248 = vmatpush1.msra.mxu0 0.0
    %1249 = vmatprep.subr.mxu0 0.0
    %1250 = vmatpush1.msra.mxu0 0.0
    %1251 = vmatprep.subr.mxu0 0.0
    %1252 = vmatpush1.msra.mxu0 0.0
    %1253 = vmatprep.subr.mxu0 0.0
    %1254 = vmatpush1.msra.mxu0 0.0
    %1255 = vmatprep.subr.mxu0 0.0
    %1256 = vmatpush1.msra.mxu0 0.0
    %1257 = vmatprep.subr.mxu0 0.0
    %1258 = vmatpush1.msra.mxu0 0.0
    %1259 = vmatprep.subr.mxu0 0.0
    %1260 = vmatpush1.msra.mxu0 0.0
    %1261 = vmatprep.subr.mxu0 0.0
    %1262 = vmatpush1.msra.mxu0 0.0
    %1263 = vmatprep.subr.mxu0 0.0
    %1264 = vmatpush1.msra.mxu0 0.0
    %1265 = vmatprep.subr.mxu0 0.0
    %1266 = vmatpush1.msra.mxu0 0.0
    %1267 = vmatprep.subr.mxu0 0.0
    %1268 = vmatpush1.msra.mxu0 0.0
    %1269 = vmatprep.subr.mxu0 0.0
    %1270 = vmatpush1.msra.mxu0 0.0
    %1271 = vmatprep.subr.mxu0 0.0
    %1272 = vmatpush1.msra.mxu0 0.0
    %1273 = vmatprep.subr.mxu0 0.0
    %1274 = vmatpush1.msra.mxu0 0.0
    %1275 = vmatprep.subr.mxu0 0.0
    %1276 = vmatpush1.msra.mxu0 0.0
    %1277 = vmatprep.subr.mxu0 0.0
    %1278 = vmatpush1.msra.mxu0 0.0
    %1279 = vmatprep.subr.mxu0 0.0
    %1280 = vmatpush1.msra.mxu0 0.0
    %1281 = vmatprep.subr.mxu0 0.0
    %1282 = vmatpush1.msra.mxu0 0.0
    %1283 = vmatprep.subr.mxu0 0.0
    %1284 = vmatpush1.msra.mxu0 0.0
    %1285 = vmatprep.mubr.f32.mxu0 0.0
    %1286 = vmatmul.mubr.f32.gmra.mrb[0].mxu0 %v1216
    %v1287 = vpop.f32.mrb[0].mxu0
    %v1288 = vadd.f32 0.0, %v1287
    %v1289 = vpop.f32.mrb[0].mxu0
    %1290 = vmatprep.mubr.f32.mxu0 0.0
    %1291 = vmatmul.mubr.f32.gmra.mrb[0].mxu0 %v1219
    %v1292 = vpop.f32.mrb[0].mxu0
    %v1293 = vadd.f32 0.0, %v1292
    %v1294 = vpop.f32.mrb[0].mxu0
    %1295 = vdwg.mxu0
    %v1296 = vrcp.pop %v1288
    %v1297 = vrcp.pop %v1293
    %v1298 = vmul.f32 %v1212, %v1296
    %v1299 = vmul.f32 %v1214, %v1297
    %1300 = vrot.lane.b32.xlu0 %v961, 64
    %v1301 = vpop.permute.xlu0 %1300
    %1302 = vrot.lane.b32.xlu0 %v962, 64
    %v1303 = vpop.permute.xlu0 %1302
    %1304 = vrot.lane.b32.xlu0 %v963, 64
    %v1305 = vpop.permute.xlu0 %1304
    %1306 = vrot.lane.b32.xlu0 %v964, 64
    %v1307 = vpop.permute.xlu0 %1306
    %1308 = vrot.lane.b32.xlu0 %v965, 64
    %v1309 = vpop.permute.xlu0 %1308
    %1310 = vrot.lane.b32.xlu0 %v966, 64
    %v1311 = vpop.permute.xlu0 %1310
    %1312 = vrot.lane.b32.xlu0 %v967, 64
    %v1313 = vpop.permute.xlu0 %1312
    %1314 = vrot.lane.b32.xlu0 %v968, 64
    %v1315 = vpop.permute.xlu0 %1314
    %v1325 = vsel %vm302, %v1298, 0
    %v1328 = vsel %vm302, %v1299, 0
    %1330 = vmatprep.subr.mxu0 0.0
    %1331 = vmatpush1.msra.mxu0 %v1301
    %1332 = vmatprep.subr.mxu0 0.0
    %1333 = vmatpush1.msra.mxu0 %v1303
    %1334 = vmatprep.subr.mxu0 0.0
    %1335 = vmatpush1.msra.mxu0 %v1305
    %1336 = vmatprep.subr.mxu0 0.0
    %1337 = vmatpush1.msra.mxu0 %v1307
    %1338 = vmatprep.subr.mxu0 0.0
    %1339 = vmatpush1.msra.mxu0 %v1309
    %1340 = vmatprep.subr.mxu0 0.0
    %1341 = vmatpush1.msra.mxu0 %v1311
    %1342 = vmatprep.subr.mxu0 0.0
    %1343 = vmatpush1.msra.mxu0 %v1313
    %1344 = vmatprep.subr.mxu0 0.0
    %1345 = vmatpush1.msra.mxu0 %v1315
    %1346 = vmatprep.subr.mxu0 0.0
    %1347 = vmatpush1.msra.mxu0 0.0
    %1348 = vmatprep.subr.mxu0 0.0
    %1349 = vmatpush1.msra.mxu0 0.0
    %1350 = vmatprep.subr.mxu0 0.0
    %1351 = vmatpush1.msra.mxu0 0.0
    %1352 = vmatprep.subr.mxu0 0.0
    %1353 = vmatpush1.msra.mxu0 0.0
    %1354 = vmatprep.subr.mxu0 0.0
    %1355 = vmatpush1.msra.mxu0 0.0
    %1356 = vmatprep.subr.mxu0 0.0
    %1357 = vmatpush1.msra.mxu0 0.0
    %1358 = vmatprep.subr.mxu0 0.0
    %1359 = vmatpush1.msra.mxu0 0.0
    %1360 = vmatprep.subr.mxu0 0.0
    %1361 = vmatpush1.msra.mxu0 0.0
    %1362 = vmatprep.subr.mxu0 0.0
    %1363 = vmatpush1.msra.mxu0 0.0
    %1364 = vmatprep.subr.mxu0 0.0
    %1365 = vmatpush1.msra.mxu0 0.0
    %1366 = vmatprep.subr.mxu0 0.0
    %1367 = vmatpush1.msra.mxu0 0.0
    %1368 = vmatprep.subr.mxu0 0.0
    %1369 = vmatpush1.msra.mxu0 0.0
    %1370 = vmatprep.subr.mxu0 0.0
    %1371 = vmatpush1.msra.mxu0 0.0
    %1372 = vmatprep.subr.mxu0 0.0
    %1373 = vmatpush1.msra.mxu0 0.0
    %1374 = vmatprep.subr.mxu0 0.0
    %1375 = vmatpush1.msra.mxu0 0.0
    %1376 = vmatprep.subr.mxu0 0.0
    %1377 = vmatpush1.msra.mxu0 0.0
    %1378 = vmatprep.subr.mxu0 0.0
    %1379 = vmatpush1.msra.mxu0 0.0
    %1380 = vmatprep.subr.mxu0 0.0
    %1381 = vmatpush1.msra.mxu0 0.0
    %1382 = vmatprep.subr.mxu0 0.0
    %1383 = vmatpush1.msra.mxu0 0.0
    %1384 = vmatprep.subr.mxu0 0.0
    %1385 = vmatpush1.msra.mxu0 0.0
    %1386 = vmatprep.subr.mxu0 0.0
    %1387 = vmatpush1.msra.mxu0 0.0
    %1388 = vmatprep.subr.mxu0 0.0
    %1389 = vmatpush1.msra.mxu0 0.0
    %1390 = vmatprep.subr.mxu0 0.0
    %1391 = vmatpush1.msra.mxu0 0.0
    %1392 = vmatprep.subr.mxu0 0.0
    %1393 = vmatpush1.msra.mxu0 0.0
    %1394 = vmatprep.mubr.f32.mxu0 0.0
    %1395 = vmatmul.mubr.f32.gmra.mrb[0].mxu0 %v1325
    %v1396 = vpop.f32.mrb[0].mxu0
    %v1397 = vadd.f32 0.0, %v1396
    %v1398 = vpop.f32.mrb[0].mxu0
    %1399 = vmatprep.mubr.f32.mxu0 0.0
    %1400 = vmatmul.mubr.f32.gmra.mrb[0].mxu0 %v1328
    %v1401 = vpop.f32.mrb[0].mxu0
    %v1402 = vadd.f32 0.0, %v1401
    %v1403 = vpop.f32.mrb[0].mxu0
    %1404 = vdwg.mxu0
    %v1406 = vsel %vm158, %v1397, 0
    %v1409 = vsel %vm158, %v1402, 0
    %1411 = vmatprep.subr.mxu0 0.0
    %1412 = vmatpush1.msra.mxu0 %v743
    %1413 = vmatprep.subr.mxu0 0.0
    %1414 = vmatpush1.msra.mxu0 %v745
    %1415 = vmatprep.subr.mxu0 0.0
    %1416 = vmatpush1.msra.mxu0 %v747
    %1417 = vmatprep.subr.mxu0 0.0
    %1418 = vmatpush1.msra.mxu0 %v749
    %1419 = vmatprep.subr.mxu0 0.0
    %1420 = vmatpush1.msra.mxu0 0.0
    %1421 = vmatprep.subr.mxu0 0.0
    %1422 = vmatpush1.msra.mxu0 0.0
    %1423 = vmatprep.subr.mxu0 0.0
    %1424 = vmatpush1.msra.mxu0 0.0
    %1425 = vmatprep.subr.mxu0 0.0
    %1426 = vmatpush1.msra.mxu0 0.0
    %1427 = vmatprep.subr.mxu0 0.0
    %1428 = vmatpush1.msra.mxu0 0.0
    %1429 = vmatprep.subr.mxu0 0.0
    %1430 = vmatpush1.msra.mxu0 0.0
    %1431 = vmatprep.subr.mxu0 0.0
    %1432 = vmatpush1.msra.mxu0 0.0
    %1433 = vmatprep.subr.mxu0 0.0
    %1434 = vmatpush1.msra.mxu0 0.0
    %1435 = vmatprep.subr.mxu0 0.0
    %1436 = vmatpush1.msra.mxu0 0.0
    %1437 = vmatprep.subr.mxu0 0.0
    %1438 = vmatpush1.msra.mxu0 0.0
    %1439 = vmatprep.subr.mxu0 0.0
    %1440 = vmatpush1.msra.mxu0 0.0
    %1441 = vmatprep.subr.mxu0 0.0
    %1442 = vmatpush1.msra.mxu0 0.0
    %1443 = vmatprep.subr.mxu0 0.0
    %1444 = vmatpush1.msra.mxu0 0.0
    %1445 = vmatprep.subr.mxu0 0.0
    %1446 = vmatpush1.msra.mxu0 0.0
    %1447 = vmatprep.subr.mxu0 0.0
    %1448 = vmatpush1.msra.mxu0 0.0
    %1449 = vmatprep.subr.mxu0 0.0
    %1450 = vmatpush1.msra.mxu0 0.0
    %1451 = vmatprep.subr.mxu0 0.0
    %1452 = vmatpush1.msra.mxu0 0.0
    %1453 = vmatprep.subr.mxu0 0.0
    %1454 = vmatpush1.msra.mxu0 0.0
    %1455 = vmatprep.subr.mxu0 0.0
    %1456 = vmatpush1.msra.mxu0 0.0
    %1457 = vmatprep.subr.mxu0 0.0
    %1458 = vmatpush1.msra.mxu0 0.0
    %1459 = vmatprep.subr.mxu0 0.0
    %1460 = vmatpush1.msra.mxu0 0.0
    %1461 = vmatprep.subr.mxu0 0.0
    %1462 = vmatpush1.msra.mxu0 0.0
    %1463 = vmatprep.subr.mxu0 0.0
    %1464 = vmatpush1.msra.mxu0 0.0
    %1465 = vmatprep.subr.mxu0 0.0
    %1466 = vmatpush1.msra.mxu0 0.0
    %1467 = vmatprep.subr.mxu0 0.0
    %1468 = vmatpush1.msra.mxu0 0.0
    %1469 = vmatprep.subr.mxu0 0.0
    %1470 = vmatpush1.msra.mxu0 0.0
    %1471 = vmatprep.subr.mxu0 0.0
    %1472 = vmatpush1.msra.mxu0 0.0
    %1473 = vmatprep.subr.mxu0 0.0
    %1474 = vmatpush1.msra.mxu0 0.0
    %1475 = vmatprep.mubr.f32.mxu0 0.0
    %1476 = vmatmul.mubr.f32.gmra.mrb[0].mxu0 %v1406
    %v1477 = vpop.f32.mrb[0].mxu0
    %v1478 = vadd.f32 %v737, %v1477
    %v1479 = vpop.f32.mrb[0].mxu0
    %1480 = vmatprep.mubr.f32.mxu0 0.0
    %1481 = vmatmul.mubr.f32.gmra.mrb[0].mxu0 %v1409
    %v1482 = vpop.f32.mrb[0].mxu0
    %v1483 = vadd.f32 %v737, %v1482
    %v1484 = vpop.f32.mrb[0].mxu0
    %1485 = vdwg.mxu0
    %v1486 = vadd.f32 %v878, %v1478
    %v1487 = vadd.f32 %v879, %v1483
    %v1488 = vsel %vm158, %v1486, 0.0
    %1489 = vadd.xlane.f32.xlu0 %v1488
    %v1490 = vpop.xlane.xlu0 %1489
    %v1491 = vsel %vm158, %v1487, 0.0
    %1492 = vadd.xlane.f32.xlu0 %v1491
    %v1493 = vpop.xlane.xlu0 %1492
    %v1494 = vmul.f32 %v1490, %v843
    %v1495 = vmul.f32 %v1493, %v843
    %v1496 = vsub.f32 %v1486, %v1494
    %v1497 = vsub.f32 %v1487, %v1495
    %v1498 = vmul.f32 %v1496, %v1496
    %v1499 = vmul.f32 %v1497, %v1497
    %v1500 = vsel %vm158, %v1498, 0.0
    %1501 = vadd.xlane.f32.xlu0 %v1500
    %v1502 = vpop.xlane.xlu0 %1501
    %v1503 = vsel %vm158, %v1499, 0.0
    %1504 = vadd.xlane.f32.xlu0 %v1503
    %v1505 = vpop.xlane.xlu0 %1504
    %v1506 = vmul.f32 %v1502, %v843
    %v1507 = vmul.f32 %v1505, %v843
    %v1508 = vadd.f32 %v1506, 1e-05
    %v1509 = vadd.f32 %v1507, 1e-05
    %v1510 = vrsqrt.pop %v1508
    %v1511 = vrsqrt.pop %v1509
    %v1512 = vmul.f32 %v1496, %v1510
    %v1513 = vmul.f32 %v1497, %v1511
    %v1514 = vmul.f32 %v1512, %v867
    %v1515 = vmul.f32 %v1513, %v867
    %v1516 = vadd.f32 %v1514, %v873
    %v1517 = vadd.f32 %v1515, %v873
    %v1518 = vadd.f32 %v1486, %v1516
    %v1519 = vadd.f32 %v1487, %v1517
    %v1520 = vsel %vm158, %v1518, 0.0
    %1521 = vadd.xlane.f32.xlu0 %v1520
    %v1522 = vpop.xlane.xlu0 %1521
    %v1523 = vsel %vm158, %v1519, 0.0
    %1524 = vadd.xlane.f32.xlu0 %v1523
    %v1525 = vpop.xlane.xlu0 %1524
    %v1526 = vmul.f32 %v1522, %v843
    %v1527 = vmul.f32 %v1525, %v843
    %v1528 = vsub.f32 %v1518, %v1526
    %v1529 = vsub.f32 %v1519, %v1527
    %v1530 = vmul.f32 %v1528, %v1528
    %v1531 = vmul.f32 %v1529, %v1529
    %v1532 = vsel %vm158, %v1530, 0.0
    %1533 = vadd.xlane.f32.xlu0 %v1532
    %v1534 = vpop.xlane.xlu0 %1533
    %v1535 = vsel %vm158, %v1531, 0.0
    %1536 = vadd.xlane.f32.xlu0 %v1535
    %v1537 = vpop.xlane.xlu0 %1536
    %v1538 = vmul.f32 %v1534, %v843
    %v1539 = vmul.f32 %v1537, %v843
    %v1540 = vadd.f32 %v1538, 1e-05
    %v1541 = vadd.f32 %v1539, 1e-05
    %v1542 = vrsqrt.pop %v1540
    %v1543 = vrsqrt.pop %v1541
    %v1544 = vmul.f32 %v1528, %v1542
    %v1545 = vmul.f32 %v1529, %v1543
    %v1546 = vlaneseq
    %v1547 = vshrl.u32 %v1546, 7
    %v1548 = vsub.s32 4, %v1547
    %v1549 = vrot.slane %v44, %v1548
    %v1550 = vmul.f32 %v1544, %v1549
    %v1551 = vmul.f32 %v1545, %v1549
    %v1552 = vlaneseq
    %v1553 = vshrl.u32 %v1552, 7
    %v1554 = vsub.s32 5, %v1553
    %v1555 = vrot.slane %v44, %v1554
    %v1556 = vadd.f32 %v1550, %v1555
    %v1557 = vadd.f32 %v1551, %v1555
    %v1558 = vlaneseq
    %v1559 = vshrl.u32 %v1558, 7
    %v1560 = vsub.s32 0, %v1559
    %v1561 = vrot.slane %v57, %v1560
    %v1562 = vlaneseq
    %v1563 = vshrl.u32 %v1562, 7
    %v1564 = vsub.s32 0, %v1563
    %v1565 = vrot.slane %v58, %v1564
    %v1566 = vlaneseq
    %v1567 = vshrl.u32 %v1566, 7
    %v1568 = vsub.s32 0, %v1567
    %v1569 = vrot.slane %v59, %v1568
    %v1571 = vsel %vm158, %v1556, 0
    %v1574 = vsel %vm158, %v1557, 0
    %1576 = vmatprep.subr.mxu0 %v46
    %1577 = vmatpush1.msra.mxu0 %v45
    %1578 = vmatprep.subr.mxu0 %v49
    %1579 = vmatpush1.msra.mxu0 %v48
    %1580 = vmatprep.subr.mxu0 %v52
    %1581 = vmatpush1.msra.mxu0 %v51
    %1582 = vmatprep.subr.mxu0 %v55
    %1583 = vmatpush1.msra.mxu0 %v54
    %1584 = vmatprep.subr.mxu0 0.0
    %1585 = vmatpush1.msra.mxu0 0.0
    %1586 = vmatprep.subr.mxu0 0.0
    %1587 = vmatpush1.msra.mxu0 0.0
    %1588 = vmatprep.subr.mxu0 0.0
    %1589 = vmatpush1.msra.mxu0 0.0
    %1590 = vmatprep.subr.mxu0 0.0
    %1591 = vmatpush1.msra.mxu0 0.0
    %1592 = vmatprep.subr.mxu0 0.0
    %1593 = vmatpush1.msra.mxu0 0.0
    %1594 = vmatprep.subr.mxu0 0.0
    %1595 = vmatpush1.msra.mxu0 0.0
    %1596 = vmatprep.subr.mxu0 0.0
    %1597 = vmatpush1.msra.mxu0 0.0
    %1598 = vmatprep.subr.mxu0 0.0
    %1599 = vmatpush1.msra.mxu0 0.0
    %1600 = vmatprep.subr.mxu0 0.0
    %1601 = vmatpush1.msra.mxu0 0.0
    %1602 = vmatprep.subr.mxu0 0.0
    %1603 = vmatpush1.msra.mxu0 0.0
    %1604 = vmatprep.subr.mxu0 0.0
    %1605 = vmatpush1.msra.mxu0 0.0
    %1606 = vmatprep.subr.mxu0 0.0
    %1607 = vmatpush1.msra.mxu0 0.0
    %1608 = vmatprep.subr.mxu0 0.0
    %1609 = vmatpush1.msra.mxu0 0.0
    %1610 = vmatprep.subr.mxu0 0.0
    %1611 = vmatpush1.msra.mxu0 0.0
    %1612 = vmatprep.subr.mxu0 0.0
    %1613 = vmatpush1.msra.mxu0 0.0
    %1614 = vmatprep.subr.mxu0 0.0
    %1615 = vmatpush1.msra.mxu0 0.0
    %1616 = vmatprep.subr.mxu0 0.0
    %1617 = vmatpush1.msra.mxu0 0.0
    %1618 = vmatprep.subr.mxu0 0.0
    %1619 = vmatpush1.msra.mxu0 0.0
    %1620 = vmatprep.subr.mxu0 0.0
    %1621 = vmatpush1.msra.mxu0 0.0
    %1622 = vmatprep.subr.mxu0 0.0
    %1623 = vmatpush1.msra.mxu0 0.0
    %1624 = vmatprep.subr.mxu0 0.0
    %1625 = vmatpush1.msra.mxu0 0.0
    %1626 = vmatprep.subr.mxu0 0.0
    %1627 = vmatpush1.msra.mxu0 0.0
    %1628 = vmatprep.subr.mxu0 0.0
    %1629 = vmatpush1.msra.mxu0 0.0
    %1630 = vmatprep.subr.mxu0 0.0
    %1631 = vmatpush1.msra.mxu0 0.0
    %1632 = vmatprep.subr.mxu0 0.0
    %1633 = vmatpush1.msra.mxu0 0.0
    %1634 = vmatprep.subr.mxu0 0.0
    %1635 = vmatpush1.msra.mxu0 0.0
    %1636 = vmatprep.subr.mxu0 0.0
    %1637 = vmatpush1.msra.mxu0 0.0
    %1638 = vmatprep.subr.mxu0 0.0
    %1639 = vmatpush1.msra.mxu0 0.0
    %1640 = vmatprep.mubr.f32.mxu0 0.0
    %1641 = vmatmul.mubr.f32.gmra.mrb[0].mxu0 %v1571
    %v1642 = vpop.f32.mrb[0].mxu0
    %v1643 = vadd.f32 %v1561, %v1642
    %v1644 = vpop.f32.mrb[0].mxu0
    %v1645 = vadd.f32 %v1565, %v1644
    %1646 = vmatprep.mubr.f32.mxu0 0.0
    %1647 = vmatmul.mubr.f32.gmra.mrb[0].mxu0 %v1574
    %v1648 = vpop.f32.mrb[0].mxu0
    %v1649 = vadd.f32 %v1561, %v1648
    %v1650 = vpop.f32.mrb[0].mxu0
    %v1651 = vadd.f32 %v1565, %v1650
    %1652 = vdwg.mxu0
    %1653 = vmatprep.subr.mxu0 0.0
    %1654 = vmatpush1.msra.mxu0 %v47
    %1655 = vmatprep.subr.mxu0 0.0
    %1656 = vmatpush1.msra.mxu0 %v50
    %1657 = vmatprep.subr.mxu0 0.0
    %1658 = vmatpush1.msra.mxu0 %v53
    %1659 = vmatprep.subr.mxu0 0.0
    %1660 = vmatpush1.msra.mxu0 %v56
    %1661 = vmatprep.subr.mxu0 0.0
    %1662 = vmatpush1.msra.mxu0 0.0
    %1663 = vmatprep.subr.mxu0 0.0
    %1664 = vmatpush1.msra.mxu0 0.0
    %1665 = vmatprep.subr.mxu0 0.0
    %1666 = vmatpush1.msra.mxu0 0.0
    %1667 = vmatprep.subr.mxu0 0.0
    %1668 = vmatpush1.msra.mxu0 0.0
    %1669 = vmatprep.subr.mxu0 0.0
    %1670 = vmatpush1.msra.mxu0 0.0
    %1671 = vmatprep.subr.mxu0 0.0
    %1672 = vmatpush1.msra.mxu0 0.0
    %1673 = vmatprep.subr.mxu0 0.0
    %1674 = vmatpush1.msra.mxu0 0.0
    %1675 = vmatprep.subr.mxu0 0.0
    %1676 = vmatpush1.msra.mxu0 0.0
    %1677 = vmatprep.subr.mxu0 0.0
    %1678 = vmatpush1.msra.mxu0 0.0
    %1679 = vmatprep.subr.mxu0 0.0
    %1680 = vmatpush1.msra.mxu0 0.0
    %1681 = vmatprep.subr.mxu0 0.0
    %1682 = vmatpush1.msra.mxu0 0.0
    %1683 = vmatprep.subr.mxu0 0.0
    %1684 = vmatpush1.msra.mxu0 0.0
    %1685 = vmatprep.subr.mxu0 0.0
    %1686 = vmatpush1.msra.mxu0 0.0
    %1687 = vmatprep.subr.mxu0 0.0
    %1688 = vmatpush1.msra.mxu0 0.0
    %1689 = vmatprep.subr.mxu0 0.0
    %1690 = vmatpush1.msra.mxu0 0.0
    %1691 = vmatprep.subr.mxu0 0.0
    %1692 = vmatpush1.msra.mxu0 0.0
    %1693 = vmatprep.subr.mxu0 0.0
    %1694 = vmatpush1.msra.mxu0 0.0
    %1695 = vmatprep.subr.mxu0 0.0
    %1696 = vmatpush1.msra.mxu0 0.0
    %1697 = vmatprep.subr.mxu0 0.0
    %1698 = vmatpush1.msra.mxu0 0.0
    %1699 = vmatprep.subr.mxu0 0.0
    %1700 = vmatpush1.msra.mxu0 0.0
    %1701 = vmatprep.subr.mxu0 0.0
    %1702 = vmatpush1.msra.mxu0 0.0
    %1703 = vmatprep.subr.mxu0 0.0
    %1704 = vmatpush1.msra.mxu0 0.0
    %1705 = vmatprep.subr.mxu0 0.0
    %1706 = vmatpush1.msra.mxu0 0.0
    %1707 = vmatprep.subr.mxu0 0.0
    %1708 = vmatpush1.msra.mxu0 0.0
    %1709 = vmatprep.subr.mxu0 0.0
    %1710 = vmatpush1.msra.mxu0 0.0
    %1711 = vmatprep.subr.mxu0 0.0
    %1712 = vmatpush1.msra.mxu0 0.0
    %1713 = vmatprep.subr.mxu0 0.0
    %1714 = vmatpush1.msra.mxu0 0.0
    %1715 = vmatprep.subr.mxu0 0.0
    %1716 = vmatpush1.msra.mxu0 0.0
    %1717 = vmatprep.mubr.f32.mxu0 0.0
    %1718 = vmatmul.mubr.f32.gmra.mrb[0].mxu0 %v1571
    %v1719 = vpop.f32.mrb[0].mxu0
    %v1720 = vadd.f32 %v1569, %v1719
    %v1721 = vpop.f32.mrb[0].mxu0
    %1722 = vmatprep.mubr.f32.mxu0 0.0
    %1723 = vmatmul.mubr.f32.gmra.mrb[0].mxu0 %v1574
    %v1724 = vpop.f32.mrb[0].mxu0
    %v1725 = vadd.f32 %v1569, %v1724
    %v1726 = vpop.f32.mrb[0].mxu0
    %1727 = vdwg.mxu0
    %v1728 = vmul.f32 %v1643, 0.5
    %v1729 = vmul.f32 %v1645, 0.5
    %v1730 = vmul.f32 %v1720, 0.5
    %v1731 = vmul.f32 %v1649, 0.5
    %v1732 = vmul.f32 %v1651, 0.5
    %v1733 = vmul.f32 %v1725, 0.5
    %v1734 = vmul.f32 %v1643, 0.70710677
    %v1735 = vmul.f32 %v1645, 0.70710677
    %v1736 = vmul.f32 %v1720, 0.70710677
    %v1737 = vmul.f32 %v1649, 0.70710677
    %v1738 = vmul.f32 %v1651, 0.70710677
    %v1739 = vmul.f32 %v1725, 0.70710677
    %v1740 = verf.f32.pop %v1734
    %v1741 = verf.f32.pop %v1735
    %v1742 = verf.f32.pop %v1736
    %v1743 = verf.f32.pop %v1737
    %v1744 = verf.f32.pop %v1738
    %v1745 = verf.f32.pop %v1739
    %v1746 = vadd.f32 %v1740, 1.0
    %v1747 = vadd.f32 %v1741, 1.0
    %v1748 = vadd.f32 %v1742, 1.0
    %v1749 = vadd.f32 %v1743, 1.0
    %v1750 = vadd.f32 %v1744, 1.0
    %v1751 = vadd.f32 %v1745, 1.0
    %v1752 = vmul.f32 %v1728, %v1746
    %v1753 = vmul.f32 %v1729, %v1747
    %v1754 = vmul.f32 %v1730, %v1748
    %v1755 = vmul.f32 %v1731, %v1749
    %v1756 = vmul.f32 %v1732, %v1750
    %v1757 = vmul.f32 %v1733, %v1751
    %v1758 = vlaneseq
    %v1759 = vshrl.u32 %v1758, 7
    %v1760 = vsub.s32 6, %v1759
    %v1761 = vrot.slane %v44, %v1760
    %1762 = vmatprep.subr.mxu0 0.0
    %1763 = vmatpush1.msra.mxu0 %v60
    %1764 = vmatprep.subr.mxu0 0.0
    %1765 = vmatpush1.msra.mxu0 %v61
    %1766 = vmatprep.subr.mxu0 0.0
    %1767 = vmatpush1.msra.mxu0 %v62
    %1768 = vmatprep.subr.mxu0 0.0
    %1769 = vmatpush1.msra.mxu0 %v63
    %1770 = vmatprep.subr.mxu0 0.0
    %1771 = vmatpush1.msra.mxu0 %v64
    %1772 = vmatprep.subr.mxu0 0.0
    %1773 = vmatpush1.msra.mxu0 %v65
    %1774 = vmatprep.subr.mxu0 0.0
    %1775 = vmatpush1.msra.mxu0 %v66
    %1776 = vmatprep.subr.mxu0 0.0
    %1777 = vmatpush1.msra.mxu0 %v67
    %1778 = vmatprep.subr.mxu0 0.0
    %1779 = vmatpush1.msra.mxu0 %v68
    %1780 = vmatprep.subr.mxu0 0.0
    %1781 = vmatpush1.msra.mxu0 %v69
    %1782 = vmatprep.subr.mxu0 0.0
    %1783 = vmatpush1.msra.mxu0 %v70
    %1784 = vmatprep.subr.mxu0 0.0
    %1785 = vmatpush1.msra.mxu0 %v71
    %1786 = vmatprep.subr.mxu0 0.0
    %1787 = vmatpush1.msra.mxu0 %v72
    %1788 = vmatprep.subr.mxu0 0.0
    %1789 = vmatpush1.msra.mxu0 %v73
    %1790 = vmatprep.subr.mxu0 0.0
    %1791 = vmatpush1.msra.mxu0 %v74
    %1792 = vmatprep.subr.mxu0 0.0
    %1793 = vmatpush1.msra.mxu0 %v75
    %1794 = vmatprep.subr.mxu0 0.0
    %1795 = vmatpush1.msra.mxu0 %v76
    %1796 = vmatprep.subr.mxu0 0.0
    %1797 = vmatpush1.msra.mxu0 %v77
    %1798 = vmatprep.subr.mxu0 0.0
    %1799 = vmatpush1.msra.mxu0 %v78
    %1800 = vmatprep.subr.mxu0 0.0
    %1801 = vmatpush1.msra.mxu0 %v79
    %1802 = vmatprep.subr.mxu0 0.0
    %1803 = vmatpush1.msra.mxu0 %v80
    %1804 = vmatprep.subr.mxu0 0.0
    %1805 = vmatpush1.msra.mxu0 %v81
    %1806 = vmatprep.subr.mxu0 0.0
    %1807 = vmatpush1.msra.mxu0 %v82
    %1808 = vmatprep.subr.mxu0 0.0
    %1809 = vmatpush1.msra.mxu0 %v83
    %1810 = vmatprep.subr.mxu0 0.0
    %1811 = vmatpush1.msra.mxu0 %v84
    %1812 = vmatprep.subr.mxu0 0.0
    %1813 = vmatpush1.msra.mxu0 %v85
    %1814 = vmatprep.subr.mxu0 0.0
    %1815 = vmatpush1.msra.mxu0 %v86
    %1816 = vmatprep.subr.mxu0 0.0
    %1817 = vmatpush1.msra.mxu0 %v87
    %1818 = vmatprep.subr.mxu0 0.0
    %1819 = vmatpush1.msra.mxu0 %v88
    %1820 = vmatprep.subr.mxu0 0.0
    %1821 = vmatpush1.msra.mxu0 %v89
    %1822 = vmatprep.subr.mxu0 0.0
    %1823 = vmatpush1.msra.mxu0 %v90
    %1824 = vmatprep.subr.mxu0 0.0
    %1825 = vmatpush1.msra.mxu0 %v91
    %1826 = vmatprep.mubr.f32.mxu0 %v1753
    %1827 = vmatmul.mubr.f32.gmra.mrb[0].mxu0 %v1752
    %v1828 = vpop.f32.mrb[0].mxu0
    %v1829 = vadd.f32 %v1761, %v1828
    %v1830 = vpop.f32.mrb[0].mxu0
    %1831 = vmatprep.mubr.f32.mxu0 %v1756
    %1832 = vmatmul.mubr.f32.gmra.mrb[0].mxu0 %v1755
    %v1833 = vpop.f32.mrb[0].mxu0
    %v1834 = vadd.f32 %v1761, %v1833
    %v1835 = vpop.f32.mrb[0].mxu0
    %1836 = vdwg.mxu0
    %1837 = vmatprep.subr.mxu0 0.0
    %1838 = vmatpush1.msra.mxu0 %v92
    %1839 = vmatprep.subr.mxu0 0.0
    %1840 = vmatpush1.msra.mxu0 %v93
    %1841 = vmatprep.subr.mxu0 0.0
    %1842 = vmatpush1.msra.mxu0 %v94
    %1843 = vmatprep.subr.mxu0 0.0
    %1844 = vmatpush1.msra.mxu0 %v95
    %1845 = vmatprep.subr.mxu0 0.0
    %1846 = vmatpush1.msra.mxu0 %v96
    %1847 = vmatprep.subr.mxu0 0.0
    %1848 = vmatpush1.msra.mxu0 %v97
    %1849 = vmatprep.subr.mxu0 0.0
    %1850 = vmatpush1.msra.mxu0 %v98
    %1851 = vmatprep.subr.mxu0 0.0
    %1852 = vmatpush1.msra.mxu0 %v99
    %1853 = vmatprep.subr.mxu0 0.0
    %1854 = vmatpush1.msra.mxu0 %v100
    %1855 = vmatprep.subr.mxu0 0.0
    %1856 = vmatpush1.msra.mxu0 %v101
    %1857 = vmatprep.subr.mxu0 0.0
    %1858 = vmatpush1.msra.mxu0 %v102
    %1859 = vmatprep.subr.mxu0 0.0
    %1860 = vmatpush1.msra.mxu0 %v103
    %1861 = vmatprep.subr.mxu0 0.0
    %1862 = vmatpush1.msra.mxu0 %v104
    %1863 = vmatprep.subr.mxu0 0.0
    %1864 = vmatpush1.msra.mxu0 %v105
    %1865 = vmatprep.subr.mxu0 0.0
    %1866 = vmatpush1.msra.mxu0 %v106
    %1867 = vmatprep.subr.mxu0 0.0
    %1868 = vmatpush1.msra.mxu0 %v107
    %1869 = vmatprep.subr.mxu0 0.0
    %1870 = vmatpush1.msra.mxu0 0.0
    %1871 = vmatprep.subr.mxu0 0.0
    %1872 = vmatpush1.msra.mxu0 0.0
    %1873 = vmatprep.subr.mxu0 0.0
    %1874 = vmatpush1.msra.mxu0 0.0
    %1875 = vmatprep.subr.mxu0 0.0
    %1876 = vmatpush1.msra.mxu0 0.0
    %1877 = vmatprep.subr.mxu0 0.0
    %1878 = vmatpush1.msra.mxu0 0.0
    %1879 = vmatprep.subr.mxu0 0.0
    %1880 = vmatpush1.msra.mxu0 0.0
    %1881 = vmatprep.subr.mxu0 0.0
    %1882 = vmatpush1.msra.mxu0 0.0
    %1883 = vmatprep.subr.mxu0 0.0
    %1884 = vmatpush1.msra.mxu0 0.0
    %1885 = vmatprep.subr.mxu0 0.0
    %1886 = vmatpush1.msra.mxu0 0.0
    %1887 = vmatprep.subr.mxu0 0.0
    %1888 = vmatpush1.msra.mxu0 0.0
    %1889 = vmatprep.subr.mxu0 0.0
    %1890 = vmatpush1.msra.mxu0 0.0
    %1891 = vmatprep.subr.mxu0 0.0
    %1892 = vmatpush1.msra.mxu0 0.0
    %1893 = vmatprep.subr.mxu0 0.0
    %1894 = vmatpush1.msra.mxu0 0.0
    %1895 = vmatprep.subr.mxu0 0.0
    %1896 = vmatpush1.msra.mxu0 0.0
    %1897 = vmatprep.subr.mxu0 0.0
    %1898 = vmatpush1.msra.mxu0 0.0
    %1899 = vmatprep.subr.mxu0 0.0
    %1900 = vmatpush1.msra.mxu0 0.0
    %1901 = vmatprep.mubr.f32.mxu0 0.0
    %1902 = vmatmul.mubr.f32.gmra.mrb[0].mxu0 %v1754
    %v1903 = vpop.f32.mrb[0].mxu0
    %v1904 = vadd.f32 %v1829, %v1903
    %v1905 = vpop.f32.mrb[0].mxu0
    %1906 = vmatprep.mubr.f32.mxu0 0.0
    %1907 = vmatmul.mubr.f32.gmra.mrb[0].mxu0 %v1757
    %v1908 = vpop.f32.mrb[0].mxu0
    %v1909 = vadd.f32 %v1834, %v1908
    %v1910 = vpop.f32.mrb[0].mxu0
    %1911 = vdwg.mxu0
    %v1912 = vadd.f32 %v1518, %v1904
    %v1913 = vadd.f32 %v1519, %v1909
    %v1914 = vsel %vm158, %v1912, 0.0
    %1915 = vadd.xlane.f32.xlu0 %v1914
    %v1916 = vpop.xlane.xlu0 %1915
    %v1917 = vsel %vm158, %v1913, 0.0
    %1918 = vadd.xlane.f32.xlu0 %v1917
    %v1919 = vpop.xlane.xlu0 %1918
    %v1920 = vmul.f32 %v1916, %v843
    %v1921 = vmul.f32 %v1919, %v843
    %v1922 = vsub.f32 %v1912, %v1920
    %v1923 = vsub.f32 %v1913, %v1921
    %v1924 = vmul.f32 %v1922, %v1922
    %v1925 = vmul.f32 %v1923, %v1923
    %v1926 = vsel %vm158, %v1924, 0.0
    %1927 = vadd.xlane.f32.xlu0 %v1926
    %v1928 = vpop.xlane.xlu0 %1927
    %v1929 = vsel %vm158, %v1925, 0.0
    %1930 = vadd.xlane.f32.xlu0 %v1929
    %v1931 = vpop.xlane.xlu0 %1930
    %v1932 = vmul.f32 %v1928, %v843
    %v1933 = vmul.f32 %v1931, %v843
    %v1934 = vadd.f32 %v1932, 1e-05
    %v1935 = vadd.f32 %v1933, 1e-05
    %v1936 = vrsqrt.pop %v1934
    %v1937 = vrsqrt.pop %v1935
    %v1938 = vmul.f32 %v1922, %v1936
    %v1939 = vmul.f32 %v1923, %v1937
    %v1940 = vmul.f32 %v1938, %v1549
    %v1941 = vmul.f32 %v1939, %v1549
    %v1942 = vadd.f32 %v1940, %v1555
    %v1943 = vadd.f32 %v1941, %v1555
    %1944 = vst.msk [vmem:[#allocation2] sm:$0xff] %vm158, %v1942
    %1945 = vst.msk [vmem:[#allocation2 + $0x8] sm:$0xff] %vm158, %v1943
    // Predicated region
    $region42: #{tpu_custom_call.1} parent=1 // pred_check
      _
    $region43: #{tpu_custom_call.1} parent=1 // pred_check_branch
      %1947 = sbr.rel (0) target = $region45
    $region44: #{tpu_custom_call.1} parent=1 // pred_region
      %s1949 = ssub.s32 256, 256
      %1950 = vsyncadd [#allocation3], %s1949
      %s1951 = sshll.u32 [#allocation2], 4
      %s1952 = int_to_ptr.vmem [resolvable:$true] %s1951
      %1957 = dma.vmem_to_hbm [thread:$0]  %s1952, 256, %s10, [#allocation3], 128, 128, 8
    $region45: #{tpu_custom_call.1} parent=1 // pred_fallthru
      _
    // Predicated region
    $region46: #{tpu_custom_call.1} parent=1 // pred_check
      _
    $region47: #{tpu_custom_call.1} parent=1 // pred_check_branch
      %1959 = sbr.rel (0) target = $region49
    $region48: #{tpu_custom_call.1} parent=1 // pred_region
      %1960 = dma.done [#allocation3], 256
    $region49: #{tpu_custom_call.1} parent=1 // pred_fallthru
      _
    %1961 = vsyncpa [#allocation3], 1

</llo_original>
